<compile_context>
chip_gen: v7x
topology: tpu7x:2x2x1
jax: 0.10.0
libtpu: 0.0.40
codegen_flags: <defaults>
</compile_context>

<pallas_src>
import jax
import jax.numpy as jnp
from jax.experimental import pallas as pl
from jax.experimental.pallas import tpu as pltpu


def _round_up(n, m):
    return ((n + m - 1) // m) * m


# ----------------------------------------------------------------------------
# Pallas kernel
# ----------------------------------------------------------------------------
def _make_kernel(layer_cins, seq_len, n_classes, nc_pad, fused_gather, fuse_argmax):
    """Fused kernel body; `layer_cins` = static per-layer input-channel counts.

    Operates on a flattened (M, *) row slab, M = TB * seq_len rows
    (sequence on sublanes, channels on lanes).
    """

    def kernel(*refs):
        out_ref = refs[-1]

        if fused_gather:
            ids_ref, table_ref = refs[0], refs[1]
            param_refs = refs[2:-1]
            M = ids_ref.shape[0]
            v_pad = table_ref.shape[0]
            # Embedding gather fused as a one-hot MXU matmul against the VMEM-resident
            # (zero-padded) table.  Exact: one-hot rows select table rows bit-for-bit.
            onehot = (ids_ref[...] ==
                      jax.lax.broadcasted_iota(jnp.int32, (M, v_pad), 1)
                      ).astype(jnp.bfloat16)
            x = jnp.dot(onehot, table_ref[...],
                        preferred_element_type=jnp.float32)          # (M, E_pad) f32
        else:
            x_ref = refs[0]
            param_refs = refs[1:-1]
            M = x_ref.shape[0]
            x = x_ref[...].astype(jnp.float32)                        # (M, E) unpadded

        # Sequence-boundary masks on the flattened slab (slab always starts at a
        # sequence boundary since M is a multiple of seq_len).
        pos = jax.lax.broadcasted_iota(jnp.int32, (M, 1), 0) % seq_len
        not_first = (pos != 0).astype(jnp.float32)          # zeros the x[t-1] tap at t == 0
        not_last = (pos != seq_len - 1).astype(jnp.float32)  # zeros the x[t+1] tap at t == L-1

        idx = 0
        for c_in in layer_cins:
            w_ref, b_ref, s_ref, t_ref = param_refs[idx:idx + 4]
            idx += 4
            k_pad = w_ref.shape[0]                            # round_up(3*c_in, 128)

            xa = x[:, :c_in]                                  # real channel lanes only
            zero_row = jnp.zeros((1, c_in), jnp.float32)
            x_prev = jnp.concatenate([zero_row, xa[:-1, :]], axis=0) * not_first
            x_next = jnp.concatenate([xa[1:, :], zero_row], axis=0) * not_last

            # Lane-pack the three taps into a single K-slab -> ONE MXU matmul per layer.
            parts = [xa, x_prev, x_next]
            if k_pad > 3 * c_in:
                parts.append(jnp.zeros((M, k_pad - 3 * c_in), jnp.float32))
            x3 = jnp.concatenate(parts, axis=-1).astype(jnp.bfloat16)

            y = (jnp.dot(x3, w_ref[...], preferred_element_type=jnp.float32)
                 + b_ref[...])                                # (M, Cout_pad)
            y = jnp.maximum(y, 0.0)                           # ReLU
            x = y * s_ref[...] + t_ref[...]                   # BatchNorm1d (eval, folded)
            # Dropout: inference-mode identity.
            # TODO(synk): training-mode BatchNorm batch statistics not reproduced;
            #             bn_scale could additionally be folded into the next conv
            #             weight host-side (shift must stay explicit at boundary rows).

        w_out_ref, b_out_ref = param_refs[idx], param_refs[idx + 1]
        c_last = w_out_ref.shape[0]
        logits = (jnp.dot(x[:, :c_last].astype(jnp.bfloat16), w_out_ref[...],
                          preferred_element_type=jnp.float32)
                  + b_out_ref[...])                           # (M, nc_pad) f32

        if fuse_argmax:
            # argmax(softmax(x)) == argmax(x); padded lanes masked so they can never win.
            lane = jax.lax.broadcasted_iota(jnp.int32, (M, nc_pad), 1)
            masked = jnp.where(lane < n_classes, logits, jnp.float32(-1e30))
            row_max = jnp.max(masked, axis=-1, keepdims=True)
            pred = jnp.min(jnp.where(masked == row_max, lane, nc_pad),
                           axis=-1, keepdims=True)            # first-max tie-breaking
            out_ref[...] = pred.astype(jnp.int32)             # tiny (M, 1) int32 store
        else:
            out_ref[...] = logits                             # lane-dense (M, 128) store

    return kernel


# ----------------------------------------------------------------------------
# Parameter preparation: lane padding, tap packing, bf16 casts
# ----------------------------------------------------------------------------
def _prepare_padded_params(params):
    emb = params["embedding"]
    V, E = emb.shape
    E_pad = _round_up(E, 128)
    V_pad = _round_up(V, 128)
    table = (jnp.zeros((V_pad, E_pad), jnp.float32)
             .at[:V, :E].set(emb).astype(jnp.bfloat16))

    conv, layer_cins = [], []
    c_in = E
    for lp in params["conv_layers"]:
        w = lp["w"]                                  # (3, Cin, Cout); taps = x[t-1], x[t], x[t+1]
        c_out = w.shape[2]
        c_out_pad = _round_up(c_out, 128)
        k_pad = _round_up(3 * c_in, 128)

        # Packed-tap weight rows: [0:c)=center(w[1]), [c:2c)=left(w[0]), [2c:3c)=right(w[2]).
        w_p = jnp.zeros((k_pad, c_out_pad), jnp.float32)
        w_p = w_p.at[0 * c_in:1 * c_in, :c_out].set(w[1])
        w_p = w_p.at[1 * c_in:2 * c_in, :c_out].set(w[0])
        w_p = w_p.at[2 * c_in:3 * c_in, :c_out].set(w[2])
        w_p = w_p.astype(jnp.bfloat16)

        def pad_row(v, width=c_out_pad, n=c_out):
            return jnp.zeros((1, width), jnp.float32).at[0, :n].set(v)

        b_p = pad_row(lp["b"])
        s_p = pad_row(lp["bn_scale"])
        t_p = pad_row(lp["bn_shift"])
        # Guard: padded channel lanes must be exactly 0 so padded activations stay 0
        # through ReLU/BN and can never contaminate later matmuls or the fused argmax.
        for arr, n in ((b_p, c_out), (s_p, c_out), (t_p, c_out)):
            assert bool(jnp.all(arr[0, n:] == 0.0)), "padded lanes must be zero"

        conv.append({"w": w_p, "b": b_p, "bn_scale": s_p, "bn_shift": t_p})
        layer_cins.append(c_in)
        c_in = c_out

    n_classes = params["w_out"].shape[1]
    nc_pad = _round_up(n_classes, 128)
    w_out = (jnp.zeros((c_in, nc_pad), jnp.float32)
             .at[:, :n_classes].set(params["w_out"]).astype(jnp.bfloat16))
    b_out = jnp.zeros((1, nc_pad), jnp.float32).at[0, :n_classes].set(params["b_out"])

    return dict(table=table, V_pad=V_pad, E=E, E_pad=E_pad,
                conv=conv, layer_cins=tuple(layer_cins),
                w_out=w_out, b_out=b_out, n_classes=n_classes, nc_pad=nc_pad)


# ----------------------------------------------------------------------------
# Grid-shape selection
# ----------------------------------------------------------------------------
def _num_tensorcores():
    """Best-effort TensorCores-per-device probe (v7x=2); falls back to 1."""
    try:
        d = jax.devices()[0]
        n = getattr(d, "num_cores", None) or getattr(d, "core_count", None)
        return max(1, int(n)) if n else 1
    except Exception:
        return 1


def _pick_block_batch(B, L, target_rows=2048, min_steps=1):
    """Largest TB dividing B with TB*L <= target_rows rows per slab; rows kept
    16-aligned (sublane packing) unless TB == B (full-array block); prefer
    >= min_steps grid steps (dual-TC v7x), else one big slab (v5e/v6e)."""
    cands = [tb for tb in range(1, B + 1)
             if B % tb == 0 and ((tb * L) % 16 == 0 or tb == B)]
    fitting = [tb for tb in cands if tb * L <= target_rows] or [min(cands)]
    multi = [tb for tb in fitting if B // tb >= min_steps]
    return max(multi) if multi else max(fitting)


# ----------------------------------------------------------------------------
# Wrapper
# ----------------------------------------------------------------------------
def cnn_ner_forward(token_ids, params, output_eval=False, max_onehot_vocab=4096):
    """Pallas-backed forward pass matching CnnNER.forward (eval semantics)."""
    pp = _prepare_padded_params(params)
    B, L = token_ids.shape
    R = B * L
    n_classes, nc_pad = pp["n_classes"], pp["nc_pad"]

    fused_gather = pp["V_pad"] <= max_onehot_vocab

    min_steps = 2 if _num_tensorcores() >= 2 else 1
    TB = _pick_block_batch(B, L, target_rows=2048, min_steps=min_steps)
    grid = (B // TB,)
    M = TB * L                                                   # rows per grid step

    flat_args, in_specs = [], []
    if fused_gather:
        ids2d = token_ids.reshape(R, 1).astype(jnp.int32)
        flat_args += [ids2d, pp["table"]]
        in_specs += [pl.BlockSpec((M, 1), lambda i: (i, 0)),
                     pl.BlockSpec(pp["table"].shape, lambda i: (0, 0))]
    else:
        # TODO(synk): huge-vocab fallback keeps the gather in XLA but feeds an
        #             UNPADDED (R, E) bf16 slab (4x less input DMA than 128-lane pad).
        embeds = params["embedding"][token_ids].reshape(R, pp["E"]).astype(jnp.bfloat16)
        flat_args += [embeds]
        in_specs += [pl.BlockSpec((M, pp["E"]), lambda i: (i, 0))]

    def const_spec(arr):
        nd = arr.ndim
        # Block index never changes across the grid, so the DMA is not re-issued
        # after step 0 (constant VMEM-resident operand).
        return pl.BlockSpec(arr.shape, lambda i, _nd=nd: (0,) * _nd)

    for lp in pp["conv"]:
        for key in ("w", "b", "bn_scale", "bn_shift"):
            flat_args.append(lp[key])
            in_specs.append(const_spec(lp[key]))
    for a in (pp["w_out"], pp["b_out"]):
        flat_args.append(a)
        in_specs.append(const_spec(a))

    if output_eval:
        out_shape = jax.ShapeDtypeStruct((R, 1), jnp.int32)
        out_spec = pl.BlockSpec((M, 1), lambda i: (i, 0))
    else:
        out_shape = jax.ShapeDtypeStruct((R, nc_pad), jnp.float32)
        out_spec = pl.BlockSpec((M, nc_pad), lambda i: (i, 0))

    kernel = _make_kernel(pp["layer_cins"], L, n_classes, nc_pad,
                          fused_gather=fused_gather, fuse_argmax=output_eval)

    result = pl.pallas_call(
        kernel,
        out_shape=out_shape,
        grid_spec=pltpu.PrefetchScalarGridSpec(
            num_scalar_prefetch=0,
            grid=grid,
            in_specs=in_specs,
            out_specs=out_spec,
        ),
        compiler_params=pltpu.CompilerParams(dimension_semantics=("parallel",)),
    )(*flat_args)

    if output_eval:
        return result.reshape(B, L)
    return result.reshape(B, L, nc_pad)[:, :, :n_classes]


# ----------------------------------------------------------------------------
# Deterministic parameter init (synthetic; no checkpoint loading)
# ----------------------------------------------------------------------------
def init_params(key, n_classes, n_embeddings, embed_dims, n_cnn_layers,
                n_cnn_channels=32, cnn_kernel_size=3, bn_eps=1e-5):
    keys = jax.random.split(key, 3 + 6 * n_cnn_layers)
    ki = iter(keys)

    params = {
        "embedding": 0.1 * jax.random.normal(next(ki), (n_embeddings, embed_dims),
                                             jnp.float32),
        "conv_layers": [],
    }

    c_in = embed_dims
    for _ in range(n_cnn_layers):
        # PyTorch Conv1d weight is (Cout, Cin, K); stored here as (K, Cin, Cout).
        w = 0.1 * jax.random.normal(next(ki), (cnn_kernel_size, c_in, n_cnn_channels),
                                    jnp.float32)
        b = 0.1 * jax.random.normal(next(ki), (n_cnn_channels,), jnp.float32)
        gamma = 1.0 + 0.1 * jax.random.normal(next(ki), (n_cnn_channels,), jnp.float32)
        beta = 0.1 * jax.random.normal(next(ki), (n_cnn_channels,), jnp.float32)
        run_mean = 0.05 * jax.random.normal(next(ki), (n_cnn_channels,), jnp.float32)
        run_var = 0.5 + jnp.abs(0.5 * jax.random.normal(next(ki), (n_cnn_channels,),
                                                        jnp.float32))
        bn_scale = gamma / jnp.sqrt(run_var + bn_eps)
        bn_shift = beta - run_mean * bn_scale
        params["conv_layers"].append(
            {"w": w, "b": b, "bn_scale": bn_scale, "bn_shift": bn_shift})
        c_in = n_cnn_channels

    params["w_out"] = 0.1 * jax.random.normal(next(ki), (n_cnn_channels, n_classes),
                                              jnp.float32)
    params["b_out"] = 0.1 * jax.random.normal(next(ki), (n_classes,), jnp.float32)
    return params


# ----------------------------------------------------------------------------
# Plain-JAX f32 reference (same eval semantics) for a correctness check
# ----------------------------------------------------------------------------
def reference_forward(token_ids, params):
    x = params["embedding"][token_ids].astype(jnp.float32)        # (B, L, E)
    B, L, _ = x.shape
    for lp in params["conv_layers"]:
        w = lp["w"]
        zero = jnp.zeros((B, 1, x.shape[-1]), jnp.float32)
        x_m1 = jnp.concatenate([zero, x[:, :-1]], axis=1)
        x_p1 = jnp.concatenate([x[:, 1:], zero], axis=1)
        y = (jnp.einsum("blc,cd->bld", x_m1, w[0])
             + jnp.einsum("blc,cd->bld", x, w[1])
             + jnp.einsum("blc,cd->bld", x_p1, w[2])
             + lp["b"][None, None, :])
        y = jnp.maximum(y, 0.0)
        x = y * lp["bn_scale"][None, None, :] + lp["bn_shift"][None, None, :]
    return jnp.einsum("blc,cd->bld", x, params["w_out"]) + params["b_out"][None, None, :]


# ----------------------------------------------------------------------------
if __name__ == "__main__":
    # Small hyperparameters consistent with the module.
    n_classes, n_embeddings, embed_dims = 8, 100, 32
    n_cnn_layers, n_cnn_channels = 2, 32
    B, L = 8, 16          # 128 rows total -> single slab on 1-TC chips, 2 slabs on 2-TC

    key = jax.random.PRNGKey(0)
    k_params, k_tokens = jax.random.split(key)

    params = init_params(k_params, n_classes, n_embeddings, embed_dims,
                         n_cnn_layers, n_cnn_channels)
    token_ids = jax.random.randint(k_tokens, (B, L), 0, n_embeddings, jnp.int32)

    logits = jax.block_until_ready(cnn_ner_forward(token_ids, params, output_eval=False))
    preds = jax.block_until_ready(cnn_ner_forward(token_ids, params, output_eval=True))

    ref = reference_forward(token_ids, params)
    assert logits.shape == (B, L, n_classes)
    assert preds.shape == (B, L)
    # bf16 matmuls / bf16 embedding table reassociate sums; compare loosely vs f32 ref.
    assert jnp.allclose(logits, ref, atol=3e-2, rtol=3e-2), "mismatch vs reference"
    assert jnp.array_equal(preds, jnp.argmax(logits, axis=-1)), "eval-branch mismatch"

    print("KERNEL_OK")
</pallas_src>

<mosaic_0001>
module attributes {stable_mosaic.version = 11 : i64} {
  func.func @kernel(%arg0: i32, %arg1: memref<128x1xi32, #tpu.memory_space<vmem>>, %arg2: memref<128x128xbf16, #tpu.memory_space<vmem>>, %arg3: memref<128x128xbf16, #tpu.memory_space<vmem>>, %arg4: memref<1x128xf32, #tpu.memory_space<vmem>>, %arg5: memref<1x128xf32, #tpu.memory_space<vmem>>, %arg6: memref<1x128xf32, #tpu.memory_space<vmem>>, %arg7: memref<128x128xbf16, #tpu.memory_space<vmem>>, %arg8: memref<1x128xf32, #tpu.memory_space<vmem>>, %arg9: memref<1x128xf32, #tpu.memory_space<vmem>>, %arg10: memref<1x128xf32, #tpu.memory_space<vmem>>, %arg11: memref<32x128xbf16, #tpu.memory_space<vmem>>, %arg12: memref<1x128xf32, #tpu.memory_space<vmem>>, %arg13: memref<128x128xf32, #tpu.memory_space<vmem>>) attributes {dimension_semantics = [#tpu.dimension_semantics<parallel>], iteration_bounds = array<i64: 1>, scalar_prefetch = 0 : i64, scratch_operands = 0 : i64, tpu.core_type = #tpu.core_type<tc>, window_params = [{transform_indices = @transform_0, window_bounds = array<i64: 128, 1>}, {pipeline_mode = #tpu.pipeline_mode<synchronous>, transform_indices = @transform_1, window_bounds = array<i64: 128, 128>}, {pipeline_mode = #tpu.pipeline_mode<synchronous>, transform_indices = @transform_2, window_bounds = array<i64: 128, 128>}, {pipeline_mode = #tpu.pipeline_mode<synchronous>, transform_indices = @transform_3, window_bounds = array<i64: 1, 128>}, {pipeline_mode = #tpu.pipeline_mode<synchronous>, transform_indices = @transform_4, window_bounds = array<i64: 1, 128>}, {pipeline_mode = #tpu.pipeline_mode<synchronous>, transform_indices = @transform_5, window_bounds = array<i64: 1, 128>}, {pipeline_mode = #tpu.pipeline_mode<synchronous>, transform_indices = @transform_6, window_bounds = array<i64: 128, 128>}, {pipeline_mode = #tpu.pipeline_mode<synchronous>, transform_indices = @transform_7, window_bounds = array<i64: 1, 128>}, {pipeline_mode = #tpu.pipeline_mode<synchronous>, transform_indices = @transform_8, window_bounds = array<i64: 1, 128>}, {pipeline_mode = #tpu.pipeline_mode<synchronous>, transform_indices = @transform_9, window_bounds = array<i64: 1, 128>}, {pipeline_mode = #tpu.pipeline_mode<synchronous>, transform_indices = @transform_10, window_bounds = array<i64: 32, 128>}, {pipeline_mode = #tpu.pipeline_mode<synchronous>, transform_indices = @transform_11, window_bounds = array<i64: 1, 128>}, {transform_indices = @transform_12, window_bounds = array<i64: 128, 128>}]} {
    %c0 = arith.constant 0 : index
    %c0_0 = arith.constant 0 : index
    %0 = vector.load %arg1[%c0, %c0_0] : memref<128x1xi32, #tpu.memory_space<vmem>>, vector<128x1xi32>
    %1 = tpu.iota {dimensions = array<i32: 1>} : vector<128x128xi32>
    %2 = vector.broadcast %0 : vector<128x1xi32> to vector<128x128xi32>
    %3 = arith.cmpi eq, %2, %1 : vector<128x128xi32>
    %4 = arith.extui %3 : vector<128x128xi1> to vector<128x128xi32>
    %5 = arith.sitofp %4 : vector<128x128xi32> to vector<128x128xf32>
    %6 = arith.truncf %5 : vector<128x128xf32> to vector<128x128xbf16>
    %c0_1 = arith.constant 0 : index
    %c0_2 = arith.constant 0 : index
    %7 = vector.load %arg2[%c0_1, %c0_2] : memref<128x128xbf16, #tpu.memory_space<vmem>>, vector<128x128xbf16>
    %cst = arith.constant dense<0.000000e+00> : vector<128x128xf32>
    %8 = tpu.matmul %6, %7, %cst {dimension_numbers = #tpu.dot_dimension_numbers<[1], [0], [0], [1], [0, 0, 1, 1], [], []>} : vector<128x128xbf16>, vector<128x128xbf16>, vector<128x128xf32> -> vector<128x128xf32>
    %9 = tpu.iota {dimensions = array<i32: 0>} : vector<128x1xi32>
    %c16_i32 = arith.constant 16 : i32
    %c0_i32 = arith.constant 0 : i32
    %10 = arith.cmpi eq, %c16_i32, %c0_i32 : i32
    %c1_i32 = arith.constant 1 : i32
    %11 = arith.select %10, %c1_i32, %c16_i32 : i32
    %12 = vector.broadcast %11 : i32 to vector<128x1xi32>
    %13 = arith.remsi %9, %12 : vector<128x1xi32>
    %c0_i32_3 = arith.constant 0 : i32
    %14 = vector.broadcast %c0_i32_3 : i32 to vector<128x1xi32>
    %15 = arith.cmpi ne, %13, %14 : vector<128x1xi32>
    %c0_i32_4 = arith.constant 0 : i32
    %16 = vector.broadcast %c0_i32_4 : i32 to vector<128x1xi32>
    %17 = arith.cmpi slt, %13, %16 : vector<128x1xi32>
    %c0_i32_5 = arith.constant 0 : i32
    %18 = arith.cmpi slt, %11, %c0_i32_5 : i32
    %19 = vector.broadcast %18 : i1 to vector<128x1xi1>
    %20 = vector.broadcast %19 : vector<128x1xi1> to vector<128x1xi1>
    %21 = arith.xori %17, %20 : vector<128x1xi1>
    %22 = arith.andi %21, %15 : vector<128x1xi1>
    %23 = vector.broadcast %11 : i32 to vector<128x1xi32>
    %24 = arith.addi %13, %23 : vector<128x1xi32>
    %25 = arith.select %22, %24, %13 : vector<128x1xi1>, vector<128x1xi32>
    %c0_i32_6 = arith.constant 0 : i32
    %26 = vector.broadcast %c0_i32_6 : i32 to vector<128x1xi32>
    %27 = arith.cmpi ne, %25, %26 : vector<128x1xi32>
    %28 = arith.extui %27 : vector<128x1xi1> to vector<128x1xi32>
    %29 = arith.sitofp %28 : vector<128x1xi32> to vector<128x1xf32>
    %c15_i32 = arith.constant 15 : i32
    %30 = vector.broadcast %c15_i32 : i32 to vector<128x1xi32>
    %31 = arith.cmpi ne, %25, %30 : vector<128x1xi32>
    %32 = arith.extui %31 : vector<128x1xi1> to vector<128x1xi32>
    %33 = arith.sitofp %32 : vector<128x1xi32> to vector<128x1xf32>
    %34 = vector.extract_strided_slice %8 {offsets = [0, 0], sizes = [128, 32], strides = [1, 1]} : vector<128x128xf32> to vector<128x32xf32>
    %cst_7 = arith.constant 0.000000e+00 : f32
    %35 = vector.broadcast %cst_7 : f32 to vector<1x32xf32>
    %36 = vector.extract_strided_slice %34 {offsets = [0, 0], sizes = [127, 32], strides = [1, 1]} : vector<128x32xf32> to vector<127x32xf32>
    %37 = tpu.concatenate %35, %36 in 0 : vector<1x32xf32>, vector<127x32xf32> -> vector<128x32xf32>
    %38 = vector.broadcast %29 : vector<128x1xf32> to vector<128x32xf32>
    %39 = arith.mulf %37, %38 : vector<128x32xf32>
    %40 = vector.extract_strided_slice %34 {offsets = [1, 0], sizes = [127, 32], strides = [1, 1]} : vector<128x32xf32> to vector<127x32xf32>
    %41 = tpu.concatenate %40, %35 in 0 : vector<127x32xf32>, vector<1x32xf32> -> vector<128x32xf32>
    %42 = vector.broadcast %33 : vector<128x1xf32> to vector<128x32xf32>
    %43 = arith.mulf %41, %42 : vector<128x32xf32>
    %cst_8 = arith.constant 0.000000e+00 : f32
    %44 = vector.broadcast %cst_8 : f32 to vector<128x32xf32>
    %45 = tpu.concatenate %34, %39, %43, %44 in 1 : vector<128x32xf32>, vector<128x32xf32>, vector<128x32xf32>, vector<128x32xf32> -> vector<128x128xf32>
    %46 = arith.truncf %45 : vector<128x128xf32> to vector<128x128xbf16>
    %c0_9 = arith.constant 0 : index
    %c0_10 = arith.constant 0 : index
    %47 = vector.load %arg3[%c0_9, %c0_10] : memref<128x128xbf16, #tpu.memory_space<vmem>>, vector<128x128xbf16>
    %cst_11 = arith.constant dense<0.000000e+00> : vector<128x128xf32>
    %48 = tpu.matmul %46, %47, %cst_11 {dimension_numbers = #tpu.dot_dimension_numbers<[1], [0], [0], [1], [0, 0, 1, 1], [], []>} : vector<128x128xbf16>, vector<128x128xbf16>, vector<128x128xf32> -> vector<128x128xf32>
    %c0_12 = arith.constant 0 : index
    %c0_13 = arith.constant 0 : index
    %49 = vector.load %arg4[%c0_12, %c0_13] : memref<1x128xf32, #tpu.memory_space<vmem>>, vector<1x128xf32>
    %50 = vector.broadcast %49 : vector<1x128xf32> to vector<128x128xf32>
    %51 = arith.addf %48, %50 : vector<128x128xf32>
    %cst_14 = arith.constant 0.000000e+00 : f32
    %52 = vector.broadcast %cst_14 : f32 to vector<128x128xf32>
    %53 = arith.maximumf %51, %52 : vector<128x128xf32>
    %c0_15 = arith.constant 0 : index
    %c0_16 = arith.constant 0 : index
    %54 = vector.load %arg5[%c0_15, %c0_16] : memref<1x128xf32, #tpu.memory_space<vmem>>, vector<1x128xf32>
    %55 = vector.broadcast %54 : vector<1x128xf32> to vector<128x128xf32>
    %56 = arith.mulf %53, %55 : vector<128x128xf32>
    %c0_17 = arith.constant 0 : index
    %c0_18 = arith.constant 0 : index
    %57 = vector.load %arg6[%c0_17, %c0_18] : memref<1x128xf32, #tpu.memory_space<vmem>>, vector<1x128xf32>
    %58 = vector.broadcast %57 : vector<1x128xf32> to vector<128x128xf32>
    %59 = arith.addf %56, %58 : vector<128x128xf32>
    %60 = vector.extract_strided_slice %59 {offsets = [0, 0], sizes = [128, 32], strides = [1, 1]} : vector<128x128xf32> to vector<128x32xf32>
    %cst_19 = arith.constant 0.000000e+00 : f32
    %61 = vector.broadcast %cst_19 : f32 to vector<1x32xf32>
    %62 = vector.extract_strided_slice %60 {offsets = [0, 0], sizes = [127, 32], strides = [1, 1]} : vector<128x32xf32> to vector<127x32xf32>
    %63 = tpu.concatenate %61, %62 in 0 : vector<1x32xf32>, vector<127x32xf32> -> vector<128x32xf32>
    %64 = vector.broadcast %29 : vector<128x1xf32> to vector<128x32xf32>
    %65 = arith.mulf %63, %64 : vector<128x32xf32>
    %66 = vector.extract_strided_slice %60 {offsets = [1, 0], sizes = [127, 32], strides = [1, 1]} : vector<128x32xf32> to vector<127x32xf32>
    %67 = tpu.concatenate %66, %61 in 0 : vector<127x32xf32>, vector<1x32xf32> -> vector<128x32xf32>
    %68 = vector.broadcast %33 : vector<128x1xf32> to vector<128x32xf32>
    %69 = arith.mulf %67, %68 : vector<128x32xf32>
    %cst_20 = arith.constant 0.000000e+00 : f32
    %70 = vector.broadcast %cst_20 : f32 to vector<128x32xf32>
    %71 = tpu.concatenate %60, %65, %69, %70 in 1 : vector<128x32xf32>, vector<128x32xf32>, vector<128x32xf32>, vector<128x32xf32> -> vector<128x128xf32>
    %72 = arith.truncf %71 : vector<128x128xf32> to vector<128x128xbf16>
    %c0_21 = arith.constant 0 : index
    %c0_22 = arith.constant 0 : index
    %73 = vector.load %arg7[%c0_21, %c0_22] : memref<128x128xbf16, #tpu.memory_space<vmem>>, vector<128x128xbf16>
    %cst_23 = arith.constant dense<0.000000e+00> : vector<128x128xf32>
    %74 = tpu.matmul %72, %73, %cst_23 {dimension_numbers = #tpu.dot_dimension_numbers<[1], [0], [0], [1], [0, 0, 1, 1], [], []>} : vector<128x128xbf16>, vector<128x128xbf16>, vector<128x128xf32> -> vector<128x128xf32>
    %c0_24 = arith.constant 0 : index
    %c0_25 = arith.constant 0 : index
    %75 = vector.load %arg8[%c0_24, %c0_25] : memref<1x128xf32, #tpu.memory_space<vmem>>, vector<1x128xf32>
    %76 = vector.broadcast %75 : vector<1x128xf32> to vector<128x128xf32>
    %77 = arith.addf %74, %76 : vector<128x128xf32>
    %cst_26 = arith.constant 0.000000e+00 : f32
    %78 = vector.broadcast %cst_26 : f32 to vector<128x128xf32>
    %79 = arith.maximumf %77, %78 : vector<128x128xf32>
    %c0_27 = arith.constant 0 : index
    %c0_28 = arith.constant 0 : index
    %80 = vector.load %arg9[%c0_27, %c0_28] : memref<1x128xf32, #tpu.memory_space<vmem>>, vector<1x128xf32>
    %81 = vector.broadcast %80 : vector<1x128xf32> to vector<128x128xf32>
    %82 = arith.mulf %79, %81 : vector<128x128xf32>
    %c0_29 = arith.constant 0 : index
    %c0_30 = arith.constant 0 : index
    %83 = vector.load %arg10[%c0_29, %c0_30] : memref<1x128xf32, #tpu.memory_space<vmem>>, vector<1x128xf32>
    %84 = vector.broadcast %83 : vector<1x128xf32> to vector<128x128xf32>
    %85 = arith.addf %82, %84 : vector<128x128xf32>
    %86 = vector.extract_strided_slice %85 {offsets = [0, 0], sizes = [128, 32], strides = [1, 1]} : vector<128x128xf32> to vector<128x32xf32>
    %87 = arith.truncf %86 : vector<128x32xf32> to vector<128x32xbf16>
    %c0_31 = arith.constant 0 : index
    %c0_32 = arith.constant 0 : index
    %88 = vector.load %arg11[%c0_31, %c0_32] : memref<32x128xbf16, #tpu.memory_space<vmem>>, vector<32x128xbf16>
    %cst_33 = arith.constant dense<0.000000e+00> : vector<128x128xf32>
    %89 = tpu.matmul %87, %88, %cst_33 {dimension_numbers = #tpu.dot_dimension_numbers<[1], [0], [0], [1], [0, 0, 1, 1], [], []>} : vector<128x32xbf16>, vector<32x128xbf16>, vector<128x128xf32> -> vector<128x128xf32>
    %c0_34 = arith.constant 0 : index
    %c0_35 = arith.constant 0 : index
    %90 = vector.load %arg12[%c0_34, %c0_35] : memref<1x128xf32, #tpu.memory_space<vmem>>, vector<1x128xf32>
    %91 = vector.broadcast %90 : vector<1x128xf32> to vector<128x128xf32>
    %92 = arith.addf %89, %91 : vector<128x128xf32>
    %c0_36 = arith.constant 0 : index
    %c0_37 = arith.constant 0 : index
    %93 = vector.load %arg13[%c0_36, %c0_37] : memref<128x128xf32, #tpu.memory_space<vmem>>, vector<128x128xf32>
    tpu.vector_store %arg13[%c0_36, %c0_37], %92 {strides = array<i32>} : memref<128x128xf32, #tpu.memory_space<vmem>>, vector<128x128xf32>,
    return
  }
  func.func @transform_0(%arg0: i32) -> (i32, i32) {
    %c0_i32 = arith.constant 0 : i32
    %c0_i32_0 = arith.constant 0 : i32
    return %arg0, %c0_i32 : i32, i32
  }
  func.func @transform_1(%arg0: i32) -> (i32, i32) {
    %c0_i32 = arith.constant 0 : i32
    %c0_i32_0 = arith.constant 0 : i32
    %c0_i32_1 = arith.constant 0 : i32
    return %c0_i32, %c0_i32_0 : i32, i32
  }
  func.func @transform_2(%arg0: i32) -> (i32, i32) {
    %c0_i32 = arith.constant 0 : i32
    %c0_i32_0 = arith.constant 0 : i32
    %c0_i32_1 = arith.constant 0 : i32
    return %c0_i32, %c0_i32_0 : i32, i32
  }
  func.func @transform_3(%arg0: i32) -> (i32, i32) {
    %c0_i32 = arith.constant 0 : i32
    %c0_i32_0 = arith.constant 0 : i32
    %c0_i32_1 = arith.constant 0 : i32
    return %c0_i32, %c0_i32_0 : i32, i32
  }
  func.func @transform_4(%arg0: i32) -> (i32, i32) {
    %c0_i32 = arith.constant 0 : i32
    %c0_i32_0 = arith.constant 0 : i32
    %c0_i32_1 = arith.constant 0 : i32
    return %c0_i32, %c0_i32_0 : i32, i32
  }
  func.func @transform_5(%arg0: i32) -> (i32, i32) {
    %c0_i32 = arith.constant 0 : i32
    %c0_i32_0 = arith.constant 0 : i32
    %c0_i32_1 = arith.constant 0 : i32
    return %c0_i32, %c0_i32_0 : i32, i32
  }
  func.func @transform_6(%arg0: i32) -> (i32, i32) {
    %c0_i32 = arith.constant 0 : i32
    %c0_i32_0 = arith.constant 0 : i32
    %c0_i32_1 = arith.constant 0 : i32
    return %c0_i32, %c0_i32_0 : i32, i32
  }
  func.func @transform_7(%arg0: i32) -> (i32, i32) {
    %c0_i32 = arith.constant 0 : i32
    %c0_i32_0 = arith.constant 0 : i32
    %c0_i32_1 = arith.constant 0 : i32
    return %c0_i32, %c0_i32_0 : i32, i32
  }
  func.func @transform_8(%arg0: i32) -> (i32, i32) {
    %c0_i32 = arith.constant 0 : i32
    %c0_i32_0 = arith.constant 0 : i32
    %c0_i32_1 = arith.constant 0 : i32
    return %c0_i32, %c0_i32_0 : i32, i32
  }
  func.func @transform_9(%arg0: i32) -> (i32, i32) {
    %c0_i32 = arith.constant 0 : i32
    %c0_i32_0 = arith.constant 0 : i32
    %c0_i32_1 = arith.constant 0 : i32
    return %c0_i32, %c0_i32_0 : i32, i32
  }
  func.func @transform_10(%arg0: i32) -> (i32, i32) {
    %c0_i32 = arith.constant 0 : i32
    %c0_i32_0 = arith.constant 0 : i32
    %c0_i32_1 = arith.constant 0 : i32
    return %c0_i32, %c0_i32_0 : i32, i32
  }
  func.func @transform_11(%arg0: i32) -> (i32, i32) {
    %c0_i32 = arith.constant 0 : i32
    %c0_i32_0 = arith.constant 0 : i32
    %c0_i32_1 = arith.constant 0 : i32
    return %c0_i32, %c0_i32_0 : i32, i32
  }
  func.func @transform_12(%arg0: i32) -> (i32, i32) {
    %c0_i32 = arith.constant 0 : i32
    %c0_i32_0 = arith.constant 0 : i32
    return %arg0, %c0_i32 : i32, i32
  }
}

</mosaic_0001>

<llo_original>
// kernel: tpu_custom_call.1
$region0: #{tpu_custom_call.1}
  #allocation0 [shape = 'u32[]', space=smem, size = 0x4, offset = 0x4, fixed_abs, tag = 'smem constant byte address 0x4 - core index']
  #allocation1 [shape = 'u32[144,128]{1,0:T(1,128)}', space=vmem, size = 0x12000, scoped, tag = 'internal scratch']
  %s0 = inlined_call_operand.vmem [shape: s32[128,1], index: 0, kind: input, shape index: {}]
  %s1 = inlined_call_operand.vmem [shape: bf16[128,128], index: 1, kind: input, shape index: {}]
  %s2 = inlined_call_operand.vmem [shape: bf16[128,128], index: 2, kind: input, shape index: {}]
  %s3 = inlined_call_operand.hbm [shape: f32[1,128], index: 3, kind: input, shape index: {}]
  %s4 = inlined_call_operand.hbm [shape: f32[1,128], index: 4, kind: input, shape index: {}]
  %s5 = inlined_call_operand.vmem [shape: f32[1,128], index: 5, kind: input, shape index: {}]
  %s6 = inlined_call_operand.hbm [shape: bf16[128,128], index: 6, kind: input, shape index: {}]
  %s7 = inlined_call_operand.vmem [shape: f32[1,128], index: 7, kind: input, shape index: {}]
  %s8 = inlined_call_operand.vmem [shape: f32[1,128], index: 8, kind: input, shape index: {}]
  %s9 = inlined_call_operand.vmem [shape: f32[1,128], index: 9, kind: input, shape index: {}]
  %s10 = inlined_call_operand.vmem [shape: bf16[32,128], index: 10, kind: input, shape index: {}]
  %s11 = inlined_call_operand.vmem [shape: f32[1,128], index: 11, kind: input, shape index: {}]
  %s12 = inlined_call_operand.hbm [shape: f32[128,128], index: 12, kind: output, shape index: {}]
  %s13 = sld [smem:[#allocation0]]
  $region70: #{tpu_custom_call.1} parent=0
    _
  %s15 = ssub.s32 1, %s13
  %s16 = scalar_select 0, %s15, %s13
  $region1: #{tpu_custom_call.1} parent=0
    #allocation2 [shape = 'u8[512]{0}', space=vmem, size = 0x400, scoped, tag = 'input window, operand 3, single buffered']
    #allocation3 [shape = 's32[1]{0}', space=sflag, size = 0x4, scoped, tag = 'scoped memory for tpu_custom_call.1']
    #allocation4 [shape = 's32[1]{0}', space=sflag, size = 0x4, scoped, tag = 'scoped memory for tpu_custom_call.1']
    #allocation5 [shape = 'u8[512]{0}', space=vmem, size = 0x400, scoped, tag = 'input window, operand 4, single buffered']
    #allocation6 [shape = 's32[1]{0}', space=sflag, size = 0x4, scoped, tag = 'scoped memory for tpu_custom_call.1']
    #allocation7 [shape = 'u8[32768]{0}', space=vmem, size = 0x8000, scoped, tag = 'input window, operand 6, single buffered']
    #allocation8 [shape = 'u8[65536]{0}', space=vmem, size = 0x10000, scoped, tag = 'output window, operand 0, single buffered']
    %17 = vsyncpa [#allocation3], 0
    %18 = vsyncpa [#allocation6], 0
    %19 = vsyncpa [#allocation4], 0
    // Predicated region
    $region2: #{tpu_custom_call.1} parent=1 // pred_check
      _
    $region3: #{tpu_custom_call.1} parent=1 // pred_check_branch
      %21 = sbr.rel (0) target = $region5
    $region4: #{tpu_custom_call.1} parent=1 // pred_region
      _
    $region5: #{tpu_custom_call.1} parent=1 // pred_fallthru
      _
    // Predicated region
    $region6: #{tpu_custom_call.1} parent=1 // pred_check
      _
    $region7: #{tpu_custom_call.1} parent=1 // pred_check_branch
      %23 = sbr.rel (0) target = $region9
    $region8: #{tpu_custom_call.1} parent=1 // pred_region
      _
    $region9: #{tpu_custom_call.1} parent=1 // pred_fallthru
      _
    // Predicated region
    $region10: #{tpu_custom_call.1} parent=1 // pred_check
      _
    $region11: #{tpu_custom_call.1} parent=1 // pred_check_branch
      %25 = sbr.rel (0) target = $region13
    $region12: #{tpu_custom_call.1} parent=1 // pred_region
      _
    $region13: #{tpu_custom_call.1} parent=1 // pred_fallthru
      _
    // Predicated region
    $region14: #{tpu_custom_call.1} parent=1 // pred_check
      _
    $region15: #{tpu_custom_call.1} parent=1 // pred_check_branch
      %27 = sbr.rel (0) target = $region17
    $region16: #{tpu_custom_call.1} parent=1 // pred_region
      %s29 = ssub.s32 16, 16
      %30 = vsyncadd [#allocation3], %s29
      %s32 = sshll.u32 [#allocation2], 4
      %s33 = int_to_ptr.vmem [resolvable:$true] %s32
      %35 = dma.hbm_to_vmem [thread:$0]  %s3, 16, %s33, [#allocation3]
    $region17: #{tpu_custom_call.1} parent=1 // pred_fallthru
      _
    // Predicated region
    $region18: #{tpu_custom_call.1} parent=1 // pred_check
      _
    $region19: #{tpu_custom_call.1} parent=1 // pred_check_branch
      %37 = sbr.rel (0) target = $region21
    $region20: #{tpu_custom_call.1} parent=1 // pred_region
      %s39 = ssub.s32 16, 16
      %40 = vsyncadd [#allocation6], %s39
      %s42 = sshll.u32 [#allocation5], 4
      %s43 = int_to_ptr.vmem [resolvable:$true] %s42
      %45 = dma.hbm_to_vmem [thread:$0]  %s4, 16, %s43, [#allocation6]
    $region21: #{tpu_custom_call.1} parent=1 // pred_fallthru
      _
    // Predicated region
    $region22: #{tpu_custom_call.1} parent=1 // pred_check
      _
    $region23: #{tpu_custom_call.1} parent=1 // pred_check_branch
      %47 = sbr.rel (0) target = $region25
    $region24: #{tpu_custom_call.1} parent=1 // pred_region
      _
    $region25: #{tpu_custom_call.1} parent=1 // pred_fallthru
      _
    // Predicated region
    $region26: #{tpu_custom_call.1} parent=1 // pred_check
      _
    $region27: #{tpu_custom_call.1} parent=1 // pred_check_branch
      %49 = sbr.rel (0) target = $region29
    $region28: #{tpu_custom_call.1} parent=1 // pred_region
      %s51 = ssub.s32 1024, 1024
      %52 = vsyncadd [#allocation6], %s51
      %s53 = sshll.u32 [#allocation7], 4
      %s54 = int_to_ptr.vmem [resolvable:$true] %s53
      %59 = dma.hbm_to_vmem [thread:$0]  %s6, 1024, %s54, [#allocation6], 64, 64, 4
    $region29: #{tpu_custom_call.1} parent=1 // pred_fallthru
      _
    // Predicated region
    $region30: #{tpu_custom_call.1} parent=1 // pred_check
      _
    $region31: #{tpu_custom_call.1} parent=1 // pred_check_branch
      %61 = sbr.rel (0) target = $region33
    $region32: #{tpu_custom_call.1} parent=1 // pred_region
      _
    $region33: #{tpu_custom_call.1} parent=1 // pred_fallthru
      _
    // Predicated region
    $region34: #{tpu_custom_call.1} parent=1 // pred_check
      _
    $region35: #{tpu_custom_call.1} parent=1 // pred_check_branch
      %63 = sbr.rel (0) target = $region37
    $region36: #{tpu_custom_call.1} parent=1 // pred_region
      _
    $region37: #{tpu_custom_call.1} parent=1 // pred_fallthru
      _
    // Predicated region
    $region38: #{tpu_custom_call.1} parent=1 // pred_check
      _
    $region39: #{tpu_custom_call.1} parent=1 // pred_check_branch
      %65 = sbr.rel (0) target = $region41
    $region40: #{tpu_custom_call.1} parent=1 // pred_region
      _
    $region41: #{tpu_custom_call.1} parent=1 // pred_fallthru
      _
    // Predicated region
    $region42: #{tpu_custom_call.1} parent=1 // pred_check
      _
    $region43: #{tpu_custom_call.1} parent=1 // pred_check_branch
      %67 = sbr.rel (0) target = $region45
    $region44: #{tpu_custom_call.1} parent=1 // pred_region
      _
    $region45: #{tpu_custom_call.1} parent=1 // pred_fallthru
      _
    // Predicated region
    $region46: #{tpu_custom_call.1} parent=1 // pred_check
      _
    $region47: #{tpu_custom_call.1} parent=1 // pred_check_branch
      %69 = sbr.rel (0) target = $region49
    $region48: #{tpu_custom_call.1} parent=1 // pred_region
      _
    $region49: #{tpu_custom_call.1} parent=1 // pred_fallthru
      _
    // Predicated region
    $region50: #{tpu_custom_call.1} parent=1 // pred_check
      _
    $region51: #{tpu_custom_call.1} parent=1 // pred_check_branch
      %71 = sbr.rel (0) target = $region53
    $region52: #{tpu_custom_call.1} parent=1 // pred_region
      %72 = dma.done [#allocation3], 16
    $region53: #{tpu_custom_call.1} parent=1 // pred_fallthru
      _
    // Predicated region
    $region54: #{tpu_custom_call.1} parent=1 // pred_check
      _
    $region55: #{tpu_custom_call.1} parent=1 // pred_check_branch
      %74 = sbr.rel (0) target = $region57
    $region56: #{tpu_custom_call.1} parent=1 // pred_region
      %75 = dma.done [#allocation6], 16
    $region57: #{tpu_custom_call.1} parent=1 // pred_fallthru
      _
    // Predicated region
    $region58: #{tpu_custom_call.1} parent=1 // pred_check
      _
    $region59: #{tpu_custom_call.1} parent=1 // pred_check_branch
      %77 = sbr.rel (0) target = $region61
    $region60: #{tpu_custom_call.1} parent=1 // pred_region
      %78 = dma.done [#allocation6], 1024
    $region61: #{tpu_custom_call.1} parent=1 // pred_fallthru
      _
    %v80 = vld [vmem:[%s0] sm:$0xff]
    %v81 = vld [vmem:[%s0 + $0x8] sm:$0xff]
    %v82 = vld [vmem:[%s0 + $0x10] sm:$0xff]
    %v83 = vld [vmem:[%s0 + $0x18] sm:$0xff]
    %v84 = vld [vmem:[%s0 + $0x20] sm:$0xff]
    %v85 = vld [vmem:[%s0 + $0x28] sm:$0xff]
    %v86 = vld [vmem:[%s0 + $0x30] sm:$0xff]
    %v87 = vld [vmem:[%s0 + $0x38] sm:$0xff]
    %v88 = vld [vmem:[%s0 + $0x40] sm:$0xff]
    %v89 = vld [vmem:[%s0 + $0x48] sm:$0xff]
    %v90 = vld [vmem:[%s0 + $0x50] sm:$0xff]
    %v91 = vld [vmem:[%s0 + $0x58] sm:$0xff]
    %v92 = vld [vmem:[%s0 + $0x60] sm:$0xff]
    %v93 = vld [vmem:[%s0 + $0x68] sm:$0xff]
    %v94 = vld [vmem:[%s0 + $0x70] sm:$0xff]
    %v95 = vld [vmem:[%s0 + $0x78] sm:$0xff]
    %v96 = vlaneseq
    %v97 = vand.u32 %v96, 127
    %98 = vset.pattern.permute.xlu0 0
    %99 = vperm.xlu0 %98, %v80
    %v100 = vpop.permute.xlu0 %99
    %101 = vset.pattern.permute.xlu0 0
    %102 = vperm.xlu0 %101, %v81
    %v103 = vpop.permute.xlu0 %102
    %104 = vset.pattern.permute.xlu0 0
    %105 = vperm.xlu0 %104, %v82
    %v106 = vpop.permute.xlu0 %105
    %107 = vset.pattern.permute.xlu0 0
    %108 = vperm.xlu0 %107, %v83
    %v109 = vpop.permute.xlu0 %108
    %110 = vset.pattern.permute.xlu0 0
    %111 = vperm.xlu0 %110, %v84
    %v112 = vpop.permute.xlu0 %111
    %113 = vset.pattern.permute.xlu0 0
    %114 = vperm.xlu0 %113, %v85
    %v115 = vpop.permute.xlu0 %114
    %116 = vset.pattern.permute.xlu0 0
    %117 = vperm.xlu0 %116, %v86
    %v118 = vpop.permute.xlu0 %117
    %119 = vset.pattern.permute.xlu0 0
    %120 = vperm.xlu0 %119, %v87
    %v121 = vpop.permute.xlu0 %120
    %122 = vset.pattern.permute.xlu0 0
    %123 = vperm.xlu0 %122, %v88
    %v124 = vpop.permute.xlu0 %123
    %125 = vset.pattern.permute.xlu0 0
    %126 = vperm.xlu0 %125, %v89
    %v127 = vpop.permute.xlu0 %126
    %128 = vset.pattern.permute.xlu0 0
    %129 = vperm.xlu0 %128, %v90
    %v130 = vpop.permute.xlu0 %129
    %131 = vset.pattern.permute.xlu0 0
    %132 = vperm.xlu0 %131, %v91
    %v133 = vpop.permute.xlu0 %132
    %134 = vset.pattern.permute.xlu0 0
    %135 = vperm.xlu0 %134, %v92
    %v136 = vpop.permute.xlu0 %135
    %137 = vset.pattern.permute.xlu0 0
    %138 = vperm.xlu0 %137, %v93
    %v139 = vpop.permute.xlu0 %138
    %140 = vset.pattern.permute.xlu0 0
    %141 = vperm.xlu0 %140, %v94
    %v142 = vpop.permute.xlu0 %141
    %143 = vset.pattern.permute.xlu0 0
    %144 = vperm.xlu0 %143, %v95
    %v145 = vpop.permute.xlu0 %144
    %vm146 = vcmp.eq.s32.totalorder %v100, %v97
    %vm147 = vcmp.eq.s32.totalorder %v103, %v97
    %vm148 = vcmp.eq.s32.totalorder %v106, %v97
    %vm149 = vcmp.eq.s32.totalorder %v109, %v97
    %vm150 = vcmp.eq.s32.totalorder %v112, %v97
    %vm151 = vcmp.eq.s32.totalorder %v115, %v97
    %vm152 = vcmp.eq.s32.totalorder %v118, %v97
    %vm153 = vcmp.eq.s32.totalorder %v121, %v97
    %vm154 = vcmp.eq.s32.totalorder %v124, %v97
    %vm155 = vcmp.eq.s32.totalorder %v127, %v97
    %vm156 = vcmp.eq.s32.totalorder %v130, %v97
    %vm157 = vcmp.eq.s32.totalorder %v133, %v97
    %vm158 = vcmp.eq.s32.totalorder %v136, %v97
    %vm159 = vcmp.eq.s32.totalorder %v139, %v97
    %vm160 = vcmp.eq.s32.totalorder %v142, %v97
    %vm161 = vcmp.eq.s32.totalorder %v145, %v97
    %v162 = vsel %vm146, 1, 0
    %v163 = vsel %vm147, 1, 0
    %v164 = vsel %vm148, 1, 0
    %v165 = vsel %vm149, 1, 0
    %v166 = vsel %vm150, 1, 0
    %v167 = vsel %vm151, 1, 0
    %v168 = vsel %vm152, 1, 0
    %v169 = vsel %vm153, 1, 0
    %v170 = vsel %vm154, 1, 0
    %v171 = vsel %vm155, 1, 0
    %v172 = vsel %vm156, 1, 0
    %v173 = vsel %vm157, 1, 0
    %v174 = vsel %vm158, 1, 0
    %v175 = vsel %vm159, 1, 0
    %v176 = vsel %vm160, 1, 0
    %v177 = vsel %vm161, 1, 0
    %v178 = vcvt.s32.f32 %v162
    %v179 = vcvt.s32.f32 %v163
    %v180 = vcvt.s32.f32 %v164
    %v181 = vcvt.s32.f32 %v165
    %v182 = vcvt.s32.f32 %v166
    %v183 = vcvt.s32.f32 %v167
    %v184 = vcvt.s32.f32 %v168
    %v185 = vcvt.s32.f32 %v169
    %v186 = vcvt.s32.f32 %v170
    %v187 = vcvt.s32.f32 %v171
    %v188 = vcvt.s32.f32 %v172
    %v189 = vcvt.s32.f32 %v173
    %v190 = vcvt.s32.f32 %v174
    %v191 = vcvt.s32.f32 %v175
    %v192 = vcvt.s32.f32 %v176
    %v193 = vcvt.s32.f32 %v177
    %v194 = vpack.c.bf16 %v179, %v178
    %v195 = vpack.c.bf16 %v181, %v180
    %v196 = vpack.c.bf16 %v183, %v182
    %v197 = vpack.c.bf16 %v185, %v184
    %v198 = vpack.c.bf16 %v187, %v186
    %v199 = vpack.c.bf16 %v189, %v188
    %v200 = vpack.c.bf16 %v191, %v190
    %v201 = vpack.c.bf16 %v193, %v192
    %v202 = vld [vmem:[%s1] sm:$0xf]
    %v203 = vld [vmem:[%s1 + $0x4] sm:$0xf]
    %v204 = vld [vmem:[%s1 + $0x8] sm:$0xf]
    %v205 = vld [vmem:[%s1 + $0xc] sm:$0xf]
    %v206 = vld [vmem:[%s1 + $0x10] sm:$0xf]
    %v207 = vld [vmem:[%s1 + $0x14] sm:$0xf]
    %v208 = vld [vmem:[%s1 + $0x18] sm:$0xf]
    %v209 = vld [vmem:[%s1 + $0x1c] sm:$0xf]
    %v210 = vld [vmem:[%s1 + $0x20] sm:$0xf]
    %v211 = vld [vmem:[%s1 + $0x24] sm:$0xf]
    %v212 = vld [vmem:[%s1 + $0x28] sm:$0xf]
    %v213 = vld [vmem:[%s1 + $0x2c] sm:$0xf]
    %v214 = vld [vmem:[%s1 + $0x30] sm:$0xf]
    %v215 = vld [vmem:[%s1 + $0x34] sm:$0xf]
    %v216 = vld [vmem:[%s1 + $0x38] sm:$0xf]
    %v217 = vld [vmem:[%s1 + $0x3c] sm:$0xf]
    %v234 = vunpack.c.l.b16 %v202
    %v235 = vunpack.c.l.b16 %v203
    %v236 = vunpack.c.l.b16 %v204
    %v237 = vunpack.c.l.b16 %v205
    %v238 = vunpack.c.l.b16 %v206
    %v239 = vunpack.c.l.b16 %v207
    %v240 = vunpack.c.l.b16 %v208
    %v241 = vunpack.c.l.b16 %v209
    %v242 = vunpack.c.l.b16 %v210
    %v243 = vunpack.c.l.b16 %v211
    %v244 = vunpack.c.l.b16 %v212
    %v245 = vunpack.c.l.b16 %v213
    %v246 = vunpack.c.l.b16 %v214
    %v247 = vunpack.c.l.b16 %v215
    %v248 = vunpack.c.l.b16 %v216
    %v249 = vunpack.c.l.b16 %v217
    %v250 = vpack.c.b16 %v235, %v234
    %v251 = vpack.c.b16 %v237, %v236
    %v252 = vpack.c.b16 %v239, %v238
    %v253 = vpack.c.b16 %v241, %v240
    %v254 = vpack.c.b16 %v243, %v242
    %v255 = vpack.c.b16 %v245, %v244
    %v256 = vpack.c.b16 %v247, %v246
    %v257 = vpack.c.b16 %v249, %v248
    %266 = vmatprep.subr.bf16.mxu0 0
    %267 = vmatpush1.bf16.msra.mxu0 %v250
    %268 = vmatprep.subr.bf16.mxu0 0
    %269 = vmatpush1.bf16.msra.mxu0 %v251
    %270 = vmatprep.subr.bf16.mxu0 0
    %271 = vmatpush1.bf16.msra.mxu0 %v252
    %272 = vmatprep.subr.bf16.mxu0 0
    %273 = vmatpush1.bf16.msra.mxu0 %v253
    %274 = vmatprep.subr.bf16.mxu0 0
    %275 = vmatpush1.bf16.msra.mxu0 %v254
    %276 = vmatprep.subr.bf16.mxu0 0
    %277 = vmatpush1.bf16.msra.mxu0 %v255
    %278 = vmatprep.subr.bf16.mxu0 0
    %279 = vmatpush1.bf16.msra.mxu0 %v256
    %280 = vmatprep.subr.bf16.mxu0 0
    %281 = vmatpush1.bf16.msra.mxu0 %v257
    %282 = vmatprep.subr.bf16.mxu0 0
    %283 = vmatpush1.bf16.msra.mxu0 0
    %284 = vmatprep.subr.bf16.mxu0 0
    %285 = vmatpush1.bf16.msra.mxu0 0
    %286 = vmatprep.subr.bf16.mxu0 0
    %287 = vmatpush1.bf16.msra.mxu0 0
    %288 = vmatprep.subr.bf16.mxu0 0
    %289 = vmatpush1.bf16.msra.mxu0 0
    %290 = vmatprep.subr.bf16.mxu0 0
    %291 = vmatpush1.bf16.msra.mxu0 0
    %292 = vmatprep.subr.bf16.mxu0 0
    %293 = vmatpush1.bf16.msra.mxu0 0
    %294 = vmatprep.subr.bf16.mxu0 0
    %295 = vmatpush1.bf16.msra.mxu0 0
    %296 = vmatprep.subr.bf16.mxu0 0
    %297 = vmatpush1.bf16.msra.mxu0 0
    %298 = vmatprep.mubr.bf16.mxu0 0
    %299 = vmatmul.mubr.bf16.gmra.mrb[0].mxu0 %v194
    %v300 = vpop.f32.mrb[0].mxu0
    %v301 = vadd.f32 0.0, %v300
    %v302 = vpop.f32.mrb[0].mxu0
    %v303 = vpop.f32.mrb[0].mxu0
    %v304 = vadd.f32 0.0, %v303
    %v305 = vpop.f32.mrb[0].mxu0
    %306 = vmatprep.mubr.bf16.mxu0 0
    %307 = vmatmul.mubr.bf16.gmra.mrb[0].mxu0 %v195
    %v308 = vpop.f32.mrb[0].mxu0
    %v309 = vadd.f32 0.0, %v308
    %v310 = vpop.f32.mrb[0].mxu0
    %v311 = vpop.f32.mrb[0].mxu0
    %v312 = vadd.f32 0.0, %v311
    %v313 = vpop.f32.mrb[0].mxu0
    %314 = vmatprep.mubr.bf16.mxu0 0
    %315 = vmatmul.mubr.bf16.gmra.mrb[0].mxu0 %v196
    %v316 = vpop.f32.mrb[0].mxu0
    %v317 = vadd.f32 0.0, %v316
    %v318 = vpop.f32.mrb[0].mxu0
    %v319 = vpop.f32.mrb[0].mxu0
    %v320 = vadd.f32 0.0, %v319
    %v321 = vpop.f32.mrb[0].mxu0
    %322 = vmatprep.mubr.bf16.mxu0 0
    %323 = vmatmul.mubr.bf16.gmra.mrb[0].mxu0 %v197
    %v324 = vpop.f32.mrb[0].mxu0
    %v325 = vadd.f32 0.0, %v324
    %v326 = vpop.f32.mrb[0].mxu0
    %v327 = vpop.f32.mrb[0].mxu0
    %v328 = vadd.f32 0.0, %v327
    %v329 = vpop.f32.mrb[0].mxu0
    %330 = vmatprep.mubr.bf16.mxu0 0
    %331 = vmatmul.mubr.bf16.gmra.mrb[0].mxu0 %v198
    %v332 = vpop.f32.mrb[0].mxu0
    %v333 = vadd.f32 0.0, %v332
    %v334 = vpop.f32.mrb[0].mxu0
    %v335 = vpop.f32.mrb[0].mxu0
    %v336 = vadd.f32 0.0, %v335
    %v337 = vpop.f32.mrb[0].mxu0
    %338 = vmatprep.mubr.bf16.mxu0 0
    %339 = vmatmul.mubr.bf16.gmra.mrb[0].mxu0 %v199
    %v340 = vpop.f32.mrb[0].mxu0
    %v341 = vadd.f32 0.0, %v340
    %v342 = vpop.f32.mrb[0].mxu0
    %v343 = vpop.f32.mrb[0].mxu0
    %v344 = vadd.f32 0.0, %v343
    %v345 = vpop.f32.mrb[0].mxu0
    %346 = vmatprep.mubr.bf16.mxu0 0
    %347 = vmatmul.mubr.bf16.gmra.mrb[0].mxu0 %v200
    %v348 = vpop.f32.mrb[0].mxu0
    %v349 = vadd.f32 0.0, %v348
    %v350 = vpop.f32.mrb[0].mxu0
    %v351 = vpop.f32.mrb[0].mxu0
    %v352 = vadd.f32 0.0, %v351
    %v353 = vpop.f32.mrb[0].mxu0
    %354 = vmatprep.mubr.bf16.mxu0 0
    %355 = vmatmul.mubr.bf16.gmra.mrb[0].mxu0 %v201
    %v356 = vpop.f32.mrb[0].mxu0
    %v357 = vadd.f32 0.0, %v356
    %v358 = vpop.f32.mrb[0].mxu0
    %v359 = vpop.f32.mrb[0].mxu0
    %v360 = vadd.f32 0.0, %v359
    %v361 = vpop.f32.mrb[0].mxu0
    %362 = vdwg.mxu0
    %v363 = vlaneseq
    %v364 = vshrl.u32 %v363, 7
    %v365 = vadd.s32 %v364, 8
    %v366 = vadd.s32 %v364, 16
    %v367 = vadd.s32 %v364, 24
    %v368 = vadd.s32 %v364, 32
    %v369 = vadd.s32 %v364, 40
    %v370 = vadd.s32 %v364, 48
    %v371 = vadd.s32 %v364, 56
    %v372 = vadd.s32 %v364, 64
    %v373 = vadd.s32 %v364, 72
    %v374 = vadd.s32 %v364, 80
    %v375 = vadd.s32 %v364, 88
    %v376 = vadd.s32 %v364, 96
    %v377 = vadd.s32 %v364, 104
    %v378 = vadd.s32 %v364, 112
    %v379 = vadd.s32 %v364, 120
    %vm380 = vcmp.lt.s32.totalorder %v364, 0
    %v381 = vsub.s32 0, %v364
    %v382 = vsel %vm380, %v381, %v364
    %v383 = vshrl.u32 %v382, 4
    %v384 = vand.u32 %v382, 15
    %v385 = vsub.s32 0, %v384
    %v386 = vsel %vm380, %v385, %v384
    %vm387 = vcmp.lt.s32.totalorder %v365, 0
    %v388 = vsub.s32 0, %v365
    %v389 = vsel %vm387, %v388, %v365
    %v390 = vshrl.u32 %v389, 4
    %v391 = vand.u32 %v389, 15
    %v392 = vsub.s32 0, %v391
    %v393 = vsel %vm387, %v392, %v391
    %vm394 = vcmp.lt.s32.totalorder %v366, 0
    %v395 = vsub.s32 0, %v366
    %v396 = vsel %vm394, %v395, %v366
    %v397 = vshrl.u32 %v396, 4
    %v398 = vand.u32 %v396, 15
    %v399 = vsub.s32 0, %v398
    %v400 = vsel %vm394, %v399, %v398
    %vm401 = vcmp.lt.s32.totalorder %v367, 0
    %v402 = vsub.s32 0, %v367
    %v403 = vsel %vm401, %v402, %v367
    %v404 = vshrl.u32 %v403, 4
    %v405 = vand.u32 %v403, 15
    %v406 = vsub.s32 0, %v405
    %v407 = vsel %vm401, %v406, %v405
    %vm408 = vcmp.lt.s32.totalorder %v368, 0
    %v409 = vsub.s32 0, %v368
    %v410 = vsel %vm408, %v409, %v368
    %v411 = vshrl.u32 %v410, 4
    %v412 = vand.u32 %v410, 15
    %v413 = vsub.s32 0, %v412
    %v414 = vsel %vm408, %v413, %v412
    %vm415 = vcmp.lt.s32.totalorder %v369, 0
    %v416 = vsub.s32 0, %v369
    %v417 = vsel %vm415, %v416, %v369
    %v418 = vshrl.u32 %v417, 4
    %v419 = vand.u32 %v417, 15
    %v420 = vsub.s32 0, %v419
    %v421 = vsel %vm415, %v420, %v419
    %vm422 = vcmp.lt.s32.totalorder %v370, 0
    %v423 = vsub.s32 0, %v370
    %v424 = vsel %vm422, %v423, %v370
    %v425 = vshrl.u32 %v424, 4
    %v426 = vand.u32 %v424, 15
    %v427 = vsub.s32 0, %v426
    %v428 = vsel %vm422, %v427, %v426
    %vm429 = vcmp.lt.s32.totalorder %v371, 0
    %v430 = vsub.s32 0, %v371
    %v431 = vsel %vm429, %v430, %v371
    %v432 = vshrl.u32 %v431, 4
    %v433 = vand.u32 %v431, 15
    %v434 = vsub.s32 0, %v433
    %v435 = vsel %vm429, %v434, %v433
    %vm436 = vcmp.lt.s32.totalorder %v372, 0
    %v437 = vsub.s32 0, %v372
    %v438 = vsel %vm436, %v437, %v372
    %v439 = vshrl.u32 %v438, 4
    %v440 = vand.u32 %v438, 15
    %v441 = vsub.s32 0, %v440
    %v442 = vsel %vm436, %v441, %v440
    %vm443 = vcmp.lt.s32.totalorder %v373, 0
    %v444 = vsub.s32 0, %v373
    %v445 = vsel %vm443, %v444, %v373
    %v446 = vshrl.u32 %v445, 4
    %v447 = vand.u32 %v445, 15
    %v448 = vsub.s32 0, %v447
    %v449 = vsel %vm443, %v448, %v447
    %vm450 = vcmp.lt.s32.totalorder %v374, 0
    %v451 = vsub.s32 0, %v374
    %v452 = vsel %vm450, %v451, %v374
    %v453 = vshrl.u32 %v452, 4
    %v454 = vand.u32 %v452, 15
    %v455 = vsub.s32 0, %v454
    %v456 = vsel %vm450, %v455, %v454
    %vm457 = vcmp.lt.s32.totalorder %v375, 0
    %v458 = vsub.s32 0, %v375
    %v459 = vsel %vm457, %v458, %v375
    %v460 = vshrl.u32 %v459, 4
    %v461 = vand.u32 %v459, 15
    %v462 = vsub.s32 0, %v461
    %v463 = vsel %vm457, %v462, %v461
    %vm464 = vcmp.lt.s32.totalorder %v376, 0
    %v465 = vsub.s32 0, %v376
    %v466 = vsel %vm464, %v465, %v376
    %v467 = vshrl.u32 %v466, 4
    %v468 = vand.u32 %v466, 15
    %v469 = vsub.s32 0, %v468
    %v470 = vsel %vm464, %v469, %v468
    %vm471 = vcmp.lt.s32.totalorder %v377, 0
    %v472 = vsub.s32 0, %v377
    %v473 = vsel %vm471, %v472, %v377
    %v474 = vshrl.u32 %v473, 4
    %v475 = vand.u32 %v473, 15
    %v476 = vsub.s32 0, %v475
    %v477 = vsel %vm471, %v476, %v475
    %vm478 = vcmp.lt.s32.totalorder %v378, 0
    %v479 = vsub.s32 0, %v378
    %v480 = vsel %vm478, %v479, %v378
    %v481 = vshrl.u32 %v480, 4
    %v482 = vand.u32 %v480, 15
    %v483 = vsub.s32 0, %v482
    %v484 = vsel %vm478, %v483, %v482
    %vm485 = vcmp.lt.s32.totalorder %v379, 0
    %v486 = vsub.s32 0, %v379
    %v487 = vsel %vm485, %v486, %v379
    %v488 = vshrl.u32 %v487, 4
    %v489 = vand.u32 %v487, 15
    %v490 = vsub.s32 0, %v489
    %v491 = vsel %vm485, %v490, %v489
    %vm492 = vcmp.ne.s32.totalorder %v386, 0
    %vm493 = vcmp.ne.s32.totalorder %v393, 0
    %vm494 = vcmp.ne.s32.totalorder %v400, 0
    %vm495 = vcmp.ne.s32.totalorder %v407, 0
    %vm496 = vcmp.ne.s32.totalorder %v414, 0
    %vm497 = vcmp.ne.s32.totalorder %v421, 0
    %vm498 = vcmp.ne.s32.totalorder %v428, 0
    %vm499 = vcmp.ne.s32.totalorder %v435, 0
    %vm500 = vcmp.ne.s32.totalorder %v442, 0
    %vm501 = vcmp.ne.s32.totalorder %v449, 0
    %vm502 = vcmp.ne.s32.totalorder %v456, 0
    %vm503 = vcmp.ne.s32.totalorder %v463, 0
    %vm504 = vcmp.ne.s32.totalorder %v470, 0
    %vm505 = vcmp.ne.s32.totalorder %v477, 0
    %vm506 = vcmp.ne.s32.totalorder %v484, 0
    %vm507 = vcmp.ne.s32.totalorder %v491, 0
    %vm508 = vcmp.lt.s32.totalorder %v386, 0
    %vm509 = vcmp.lt.s32.totalorder %v393, 0
    %vm510 = vcmp.lt.s32.totalorder %v400, 0
    %vm511 = vcmp.lt.s32.totalorder %v407, 0
    %vm512 = vcmp.lt.s32.totalorder %v414, 0
    %vm513 = vcmp.lt.s32.totalorder %v421, 0
    %vm514 = vcmp.lt.s32.totalorder %v428, 0
    %vm515 = vcmp.lt.s32.totalorder %v435, 0
    %vm516 = vcmp.lt.s32.totalorder %v442, 0
    %vm517 = vcmp.lt.s32.totalorder %v449, 0
    %vm518 = vcmp.lt.s32.totalorder %v456, 0
    %vm519 = vcmp.lt.s32.totalorder %v463, 0
    %vm520 = vcmp.lt.s32.totalorder %v470, 0
    %vm521 = vcmp.lt.s32.totalorder %v477, 0
    %vm522 = vcmp.lt.s32.totalorder %v484, 0
    %vm523 = vcmp.lt.s32.totalorder %v491, 0
    %vm524 = vmand %vm508, %vm492
    %vm525 = vmand %vm509, %vm493
    %vm526 = vmand %vm510, %vm494
    %vm527 = vmand %vm511, %vm495
    %vm528 = vmand %vm512, %vm496
    %vm529 = vmand %vm513, %vm497
    %vm530 = vmand %vm514, %vm498
    %vm531 = vmand %vm515, %vm499
    %vm532 = vmand %vm516, %vm500
    %vm533 = vmand %vm517, %vm501
    %vm534 = vmand %vm518, %vm502
    %vm535 = vmand %vm519, %vm503
    %vm536 = vmand %vm520, %vm504
    %vm537 = vmand %vm521, %vm505
    %vm538 = vmand %vm522, %vm506
    %vm539 = vmand %vm523, %vm507
    %v540 = vadd.s32 %v386, 16
    %v541 = vadd.s32 %v393, 16
    %v542 = vadd.s32 %v400, 16
    %v543 = vadd.s32 %v407, 16
    %v544 = vadd.s32 %v414, 16
    %v545 = vadd.s32 %v421, 16
    %v546 = vadd.s32 %v428, 16
    %v547 = vadd.s32 %v435, 16
    %v548 = vadd.s32 %v442, 16
    %v549 = vadd.s32 %v449, 16
    %v550 = vadd.s32 %v456, 16
    %v551 = vadd.s32 %v463, 16
    %v552 = vadd.s32 %v470, 16
    %v553 = vadd.s32 %v477, 16
    %v554 = vadd.s32 %v484, 16
    %v555 = vadd.s32 %v491, 16
    %v556 = vsel %vm524, %v540, %v386
    %v557 = vsel %vm525, %v541, %v393
    %v558 = vsel %vm526, %v542, %v400
    %v559 = vsel %vm527, %v543, %v407
    %v560 = vsel %vm528, %v544, %v414
    %v561 = vsel %vm529, %v545, %v421
    %v562 = vsel %vm530, %v546, %v428
    %v563 = vsel %vm531, %v547, %v435
    %v564 = vsel %vm532, %v548, %v442
    %v565 = vsel %vm533, %v549, %v449
    %v566 = vsel %vm534, %v550, %v456
    %v567 = vsel %vm535, %v551, %v463
    %v568 = vsel %vm536, %v552, %v470
    %v569 = vsel %vm537, %v553, %v477
    %v570 = vsel %vm538, %v554, %v484
    %v571 = vsel %vm539, %v555, %v491
    %vm572 = vcmp.ne.s32.totalorder %v556, 0
    %vm573 = vcmp.ne.s32.totalorder %v557, 0
    %vm574 = vcmp.ne.s32.totalorder %v558, 0
    %vm575 = vcmp.ne.s32.totalorder %v559, 0
    %vm576 = vcmp.ne.s32.totalorder %v560, 0
    %vm577 = vcmp.ne.s32.totalorder %v561, 0
    %vm578 = vcmp.ne.s32.totalorder %v562, 0
    %vm579 = vcmp.ne.s32.totalorder %v563, 0
    %vm580 = vcmp.ne.s32.totalorder %v564, 0
    %vm581 = vcmp.ne.s32.totalorder %v565, 0
    %vm582 = vcmp.ne.s32.totalorder %v566, 0
    %vm583 = vcmp.ne.s32.totalorder %v567, 0
    %vm584 = vcmp.ne.s32.totalorder %v568, 0
    %vm585 = vcmp.ne.s32.totalorder %v569, 0
    %vm586 = vcmp.ne.s32.totalorder %v570, 0
    %vm587 = vcmp.ne.s32.totalorder %v571, 0
    %v588 = vsel %vm572, 1, 0
    %v589 = vsel %vm573, 1, 0
    %v590 = vsel %vm574, 1, 0
    %v591 = vsel %vm575, 1, 0
    %v592 = vsel %vm576, 1, 0
    %v593 = vsel %vm577, 1, 0
    %v594 = vsel %vm578, 1, 0
    %v595 = vsel %vm579, 1, 0
    %v596 = vsel %vm580, 1, 0
    %v597 = vsel %vm581, 1, 0
    %v598 = vsel %vm582, 1, 0
    %v599 = vsel %vm583, 1, 0
    %v600 = vsel %vm584, 1, 0
    %v601 = vsel %vm585, 1, 0
    %v602 = vsel %vm586, 1, 0
    %v603 = vsel %vm587, 1, 0
    %v604 = vcvt.s32.f32 %v588
    %v605 = vcvt.s32.f32 %v589
    %v606 = vcvt.s32.f32 %v590
    %v607 = vcvt.s32.f32 %v591
    %v608 = vcvt.s32.f32 %v592
    %v609 = vcvt.s32.f32 %v593
    %v610 = vcvt.s32.f32 %v594
    %v611 = vcvt.s32.f32 %v595
    %v612 = vcvt.s32.f32 %v596
    %v613 = vcvt.s32.f32 %v597
    %v614 = vcvt.s32.f32 %v598
    %v615 = vcvt.s32.f32 %v599
    %v616 = vcvt.s32.f32 %v600
    %v617 = vcvt.s32.f32 %v601
    %v618 = vcvt.s32.f32 %v602
    %v619 = vcvt.s32.f32 %v603
    %vm620 = vcmp.ne.s32.totalorder %v556, 15
    %vm621 = vcmp.ne.s32.totalorder %v557, 15
    %vm622 = vcmp.ne.s32.totalorder %v558, 15
    %vm623 = vcmp.ne.s32.totalorder %v559, 15
    %vm624 = vcmp.ne.s32.totalorder %v560, 15
    %vm625 = vcmp.ne.s32.totalorder %v561, 15
    %vm626 = vcmp.ne.s32.totalorder %v562, 15
    %vm627 = vcmp.ne.s32.totalorder %v563, 15
    %vm628 = vcmp.ne.s32.totalorder %v564, 15
    %vm629 = vcmp.ne.s32.totalorder %v565, 15
    %vm630 = vcmp.ne.s32.totalorder %v566, 15
    %vm631 = vcmp.ne.s32.totalorder %v567, 15
    %vm632 = vcmp.ne.s32.totalorder %v568, 15
    %vm633 = vcmp.ne.s32.totalorder %v569, 15
    %vm634 = vcmp.ne.s32.totalorder %v570, 15
    %vm635 = vcmp.ne.s32.totalorder %v571, 15
    %v636 = vsel %vm620, 1, 0
    %v637 = vsel %vm621, 1, 0
    %v638 = vsel %vm622, 1, 0
    %v639 = vsel %vm623, 1, 0
    %v640 = vsel %vm624, 1, 0
    %v641 = vsel %vm625, 1, 0
    %v642 = vsel %vm626, 1, 0
    %v643 = vsel %vm627, 1, 0
    %v644 = vsel %vm628, 1, 0
    %v645 = vsel %vm629, 1, 0
    %v646 = vsel %vm630, 1, 0
    %v647 = vsel %vm631, 1, 0
    %v648 = vsel %vm632, 1, 0
    %v649 = vsel %vm633, 1, 0
    %v650 = vsel %vm634, 1, 0
    %v651 = vsel %vm635, 1, 0
    %v652 = vcvt.s32.f32 %v636
    %v653 = vcvt.s32.f32 %v637
    %v654 = vcvt.s32.f32 %v638
    %v655 = vcvt.s32.f32 %v639
    %v656 = vcvt.s32.f32 %v640
    %v657 = vcvt.s32.f32 %v641
    %v658 = vcvt.s32.f32 %v642
    %v659 = vcvt.s32.f32 %v643
    %v660 = vcvt.s32.f32 %v644
    %v661 = vcvt.s32.f32 %v645
    %v662 = vcvt.s32.f32 %v646
    %v663 = vcvt.s32.f32 %v647
    %v664 = vcvt.s32.f32 %v648
    %v665 = vcvt.s32.f32 %v649
    %v666 = vcvt.s32.f32 %v650
    %v667 = vcvt.s32.f32 %v651
    %vm684 = vcmask 1040384
    %v685 = vrot.slane %v301, 7
    %v686 = vrot.slane %v304, 7
    %v687 = vsel %vm684, %v685, %v686
    %v688 = vrot.slane %v309, 7
    %v689 = vsel %vm684, %v686, %v688
    %v690 = vrot.slane %v312, 7
    %v691 = vsel %vm684, %v688, %v690
    %v692 = vrot.slane %v317, 7
    %v693 = vsel %vm684, %v690, %v692
    %v694 = vrot.slane %v320, 7
    %v695 = vsel %vm684, %v692, %v694
    %v696 = vrot.slane %v325, 7
    %v697 = vsel %vm684, %v694, %v696
    %v698 = vrot.slane %v328, 7
    %v699 = vsel %vm684, %v696, %v698
    %v700 = vrot.slane %v333, 7
    %v701 = vsel %vm684, %v698, %v700
    %v702 = vrot.slane %v336, 7
    %v703 = vsel %vm684, %v700, %v702
    %v704 = vrot.slane %v341, 7
    %v705 = vsel %vm684, %v702, %v704
    %v706 = vrot.slane %v344, 7
    %v707 = vsel %vm684, %v704, %v706
    %v708 = vrot.slane %v349, 7
    %v709 = vsel %vm684, %v706, %v708
    %v710 = vrot.slane %v352, 7
    %v711 = vsel %vm684, %v708, %v710
    %v712 = vrot.slane %v357, 7
    %v713 = vsel %vm684, %v710, %v712
    %v714 = vrot.slane %v360, 7
    %v715 = vsel %vm684, %v712, %v714
    %v732 = vsel %vm684, 0.0, %v685
    %v733 = vmul.f32 %v732, %v604
    %v734 = vmul.f32 %v687, %v605
    %v735 = vmul.f32 %v689, %v606
    %v736 = vmul.f32 %v691, %v607
    %v737 = vmul.f32 %v693, %v608
    %v738 = vmul.f32 %v695, %v609
    %v739 = vmul.f32 %v697, %v610
    %v740 = vmul.f32 %v699, %v611
    %v741 = vmul.f32 %v701, %v612
    %v742 = vmul.f32 %v703, %v613
    %v743 = vmul.f32 %v705, %v614
    %v744 = vmul.f32 %v707, %v615
    %v745 = vmul.f32 %v709, %v616
    %v746 = vmul.f32 %v711, %v617
    %v747 = vmul.f32 %v713, %v618
    %v748 = vmul.f32 %v715, %v619
    %vm749 = vcmask 1046528
    %v750 = vrot.slane %v301, 1
    %v751 = vrot.slane %v304, 1
    %v752 = vsel %vm749, %v750, %v751
    %v753 = vrot.slane %v309, 1
    %v754 = vsel %vm749, %v751, %v753
    %v755 = vrot.slane %v312, 1
    %v756 = vsel %vm749, %v753, %v755
    %v757 = vrot.slane %v317, 1
    %v758 = vsel %vm749, %v755, %v757
    %v759 = vrot.slane %v320, 1
    %v760 = vsel %vm749, %v757, %v759
    %v761 = vrot.slane %v325, 1
    %v762 = vsel %vm749, %v759, %v761
    %v763 = vrot.slane %v328, 1
    %v764 = vsel %vm749, %v761, %v763
    %v765 = vrot.slane %v333, 1
    %v766 = vsel %vm749, %v763, %v765
    %v767 = vrot.slane %v336, 1
    %v768 = vsel %vm749, %v765, %v767
    %v769 = vrot.slane %v341, 1
    %v770 = vsel %vm749, %v767, %v769
    %v771 = vrot.slane %v344, 1
    %v772 = vsel %vm749, %v769, %v771
    %v773 = vrot.slane %v349, 1
    %v774 = vsel %vm749, %v771, %v773
    %v775 = vrot.slane %v352, 1
    %v776 = vsel %vm749, %v773, %v775
    %v777 = vrot.slane %v357, 1
    %v778 = vsel %vm749, %v775, %v777
    %v779 = vrot.slane %v360, 1
    %v780 = vsel %vm749, %v777, %v779
    %v797 = vsel %vm749, %v779, 0.0
    %v798 = vmul.f32 %v752, %v652
    %v799 = vmul.f32 %v754, %v653
    %v800 = vmul.f32 %v756, %v654
    %v801 = vmul.f32 %v758, %v655
    %v802 = vmul.f32 %v760, %v656
    %v803 = vmul.f32 %v762, %v657
    %v804 = vmul.f32 %v764, %v658
    %v805 = vmul.f32 %v766, %v659
    %v806 = vmul.f32 %v768, %v660
    %v807 = vmul.f32 %v770, %v661
    %v808 = vmul.f32 %v772, %v662
    %v809 = vmul.f32 %v774, %v663
    %v810 = vmul.f32 %v776, %v664
    %v811 = vmul.f32 %v778, %v665
    %v812 = vmul.f32 %v780, %v666
    %v813 = vmul.f32 %v797, %v667
    %830 = vrot.lane.b32.xlu0 %v733, 32
    %v831 = vpop.permute.xlu0 %830
    %832 = vrot.lane.b32.xlu0 %v734, 32
    %v833 = vpop.permute.xlu0 %832
    %834 = vrot.lane.b32.xlu0 %v735, 32
    %v835 = vpop.permute.xlu0 %834
    %836 = vrot.lane.b32.xlu0 %v736, 32
    %v837 = vpop.permute.xlu0 %836
    %838 = vrot.lane.b32.xlu0 %v737, 32
    %v839 = vpop.permute.xlu0 %838
    %840 = vrot.lane.b32.xlu0 %v738, 32
    %v841 = vpop.permute.xlu0 %840
    %842 = vrot.lane.b32.xlu0 %v739, 32
    %v843 = vpop.permute.xlu0 %842
    %844 = vrot.lane.b32.xlu0 %v740, 32
    %v845 = vpop.permute.xlu0 %844
    %846 = vrot.lane.b32.xlu0 %v741, 32
    %v847 = vpop.permute.xlu0 %846
    %848 = vrot.lane.b32.xlu0 %v742, 32
    %v849 = vpop.permute.xlu0 %848
    %850 = vrot.lane.b32.xlu0 %v743, 32
    %v851 = vpop.permute.xlu0 %850
    %852 = vrot.lane.b32.xlu0 %v744, 32
    %v853 = vpop.permute.xlu0 %852
    %854 = vrot.lane.b32.xlu0 %v745, 32
    %v855 = vpop.permute.xlu0 %854
    %856 = vrot.lane.b32.xlu0 %v746, 32
    %v857 = vpop.permute.xlu0 %856
    %858 = vrot.lane.b32.xlu0 %v747, 32
    %v859 = vpop.permute.xlu0 %858
    %860 = vrot.lane.b32.xlu0 %v748, 32
    %v861 = vpop.permute.xlu0 %860
    %894 = vrot.lane.b32.xlu0 %v798, 64
    %v895 = vpop.permute.xlu0 %894
    %896 = vrot.lane.b32.xlu0 %v799, 64
    %v897 = vpop.permute.xlu0 %896
    %898 = vrot.lane.b32.xlu0 %v800, 64
    %v899 = vpop.permute.xlu0 %898
    %900 = vrot.lane.b32.xlu0 %v801, 64
    %v901 = vpop.permute.xlu0 %900
    %902 = vrot.lane.b32.xlu0 %v802, 64
    %v903 = vpop.permute.xlu0 %902
    %904 = vrot.lane.b32.xlu0 %v803, 64
    %v905 = vpop.permute.xlu0 %904
    %906 = vrot.lane.b32.xlu0 %v804, 64
    %v907 = vpop.permute.xlu0 %906
    %908 = vrot.lane.b32.xlu0 %v805, 64
    %v909 = vpop.permute.xlu0 %908
    %910 = vrot.lane.b32.xlu0 %v806, 64
    %v911 = vpop.permute.xlu0 %910
    %912 = vrot.lane.b32.xlu0 %v807, 64
    %v913 = vpop.permute.xlu0 %912
    %914 = vrot.lane.b32.xlu0 %v808, 64
    %v915 = vpop.permute.xlu0 %914
    %916 = vrot.lane.b32.xlu0 %v809, 64
    %v917 = vpop.permute.xlu0 %916
    %918 = vrot.lane.b32.xlu0 %v810, 64
    %v919 = vpop.permute.xlu0 %918
    %920 = vrot.lane.b32.xlu0 %v811, 64
    %v921 = vpop.permute.xlu0 %920
    %922 = vrot.lane.b32.xlu0 %v812, 64
    %v923 = vpop.permute.xlu0 %922
    %924 = vrot.lane.b32.xlu0 %v813, 64
    %v925 = vpop.permute.xlu0 %924
    %vm942 = vcmask 261120
    %v943 = vsel %vm942, %v301, %v831
    %v944 = vsel %vm942, %v304, %v833
    %v945 = vsel %vm942, %v309, %v835
    %v946 = vsel %vm942, %v312, %v837
    %v947 = vsel %vm942, %v317, %v839
    %v948 = vsel %vm942, %v320, %v841
    %v949 = vsel %vm942, %v325, %v843
    %v950 = vsel %vm942, %v328, %v845
    %v951 = vsel %vm942, %v333, %v847
    %v952 = vsel %vm942, %v336, %v849
    %v953 = vsel %vm942, %v341, %v851
    %v954 = vsel %vm942, %v344, %v853
    %v955 = vsel %vm942, %v349, %v855
    %v956 = vsel %vm942, %v352, %v857
    %v957 = vsel %vm942, %v357, %v859
    %v958 = vsel %vm942, %v360, %v861
    %vm959 = vcmask 523264
    %v960 = vsel %vm959, %v943, %v895
    %v961 = vsel %vm959, %v944, %v897
    %v962 = vsel %vm959, %v945, %v899
    %v963 = vsel %vm959, %v946, %v901
    %v964 = vsel %vm959, %v947, %v903
    %v965 = vsel %vm959, %v948, %v905
    %v966 = vsel %vm959, %v949, %v907
    %v967 = vsel %vm959, %v950, %v909
    %v968 = vsel %vm959, %v951, %v911
    %v969 = vsel %vm959, %v952, %v913
    %v970 = vsel %vm959, %v953, %v915
    %v971 = vsel %vm959, %v954, %v917
    %v972 = vsel %vm959, %v955, %v919
    %v973 = vsel %vm959, %v956, %v921
    %v974 = vsel %vm959, %v957, %v923
    %v975 = vsel %vm959, %v958, %v925
    %vm976 = vcmask 785408
    %v977 = vsel %vm976, %v960, 0.0
    %v978 = vsel %vm976, %v961, 0.0
    %v979 = vsel %vm976, %v962, 0.0
    %v980 = vsel %vm976, %v963, 0.0
    %v981 = vsel %vm976, %v964, 0.0
    %v982 = vsel %vm976, %v965, 0.0
    %v983 = vsel %vm976, %v966, 0.0
    %v984 = vsel %vm976, %v967, 0.0
    %v985 = vsel %vm976, %v968, 0.0
    %v986 = vsel %vm976, %v969, 0.0
    %v987 = vsel %vm976, %v970, 0.0
    %v988 = vsel %vm976, %v971, 0.0
    %v989 = vsel %vm976, %v972, 0.0
    %v990 = vsel %vm976, %v973, 0.0
    %v991 = vsel %vm976, %v974, 0.0
    %v992 = vsel %vm976, %v975, 0.0
    %v993 = vpack.c.bf16 %v978, %v977
    %v994 = vpack.c.bf16 %v980, %v979
    %v995 = vpack.c.bf16 %v982, %v981
    %v996 = vpack.c.bf16 %v984, %v983
    %v997 = vpack.c.bf16 %v986, %v985
    %v998 = vpack.c.bf16 %v988, %v987
    %v999 = vpack.c.bf16 %v990, %v989
    %v1000 = vpack.c.bf16 %v992, %v991
    %v1001 = vld [vmem:[%s2] sm:$0xf]
    %v1002 = vld [vmem:[%s2 + $0x4] sm:$0xf]
    %v1003 = vld [vmem:[%s2 + $0x8] sm:$0xf]
    %v1004 = vld [vmem:[%s2 + $0xc] sm:$0xf]
    %v1005 = vld [vmem:[%s2 + $0x10] sm:$0xf]
    %v1006 = vld [vmem:[%s2 + $0x14] sm:$0xf]
    %v1007 = vld [vmem:[%s2 + $0x18] sm:$0xf]
    %v1008 = vld [vmem:[%s2 + $0x1c] sm:$0xf]
    %v1009 = vld [vmem:[%s2 + $0x20] sm:$0xf]
    %v1010 = vld [vmem:[%s2 + $0x24] sm:$0xf]
    %v1011 = vld [vmem:[%s2 + $0x28] sm:$0xf]
    %v1012 = vld [vmem:[%s2 + $0x2c] sm:$0xf]
    %v1013 = vld [vmem:[%s2 + $0x30] sm:$0xf]
    %v1014 = vld [vmem:[%s2 + $0x34] sm:$0xf]
    %v1015 = vld [vmem:[%s2 + $0x38] sm:$0xf]
    %v1016 = vld [vmem:[%s2 + $0x3c] sm:$0xf]
    %v1017 = vld [vmem:[#allocation2] sm:$0x1]
    %v1019 = vlaneseq
    %v1020 = vshrl.u32 %v1019, 7
    %v1021 = vsub.s32 0, %v1020
    %v1022 = vrot.slane %v1017, %v1021
    %v1040 = vunpack.c.l.b16 %v1001
    %v1041 = vunpack.c.l.b16 %v1002
    %v1042 = vunpack.c.l.b16 %v1003
    %v1043 = vunpack.c.l.b16 %v1004
    %v1044 = vunpack.c.l.b16 %v1005
    %v1045 = vunpack.c.l.b16 %v1006
    %v1046 = vunpack.c.l.b16 %v1007
    %v1047 = vunpack.c.l.b16 %v1008
    %v1048 = vunpack.c.l.b16 %v1009
    %v1049 = vunpack.c.l.b16 %v1010
    %v1050 = vunpack.c.l.b16 %v1011
    %v1051 = vunpack.c.l.b16 %v1012
    %v1052 = vunpack.c.l.b16 %v1013
    %v1053 = vunpack.c.l.b16 %v1014
    %v1054 = vunpack.c.l.b16 %v1015
    %v1055 = vunpack.c.l.b16 %v1016
    %v1056 = vpack.c.b16 %v1041, %v1040
    %v1057 = vpack.c.b16 %v1043, %v1042
    %v1058 = vpack.c.b16 %v1045, %v1044
    %v1059 = vpack.c.b16 %v1047, %v1046
    %v1060 = vpack.c.b16 %v1049, %v1048
    %v1061 = vpack.c.b16 %v1051, %v1050
    %v1062 = vpack.c.b16 %v1053, %v1052
    %v1063 = vpack.c.b16 %v1055, %v1054
    %1072 = vmatprep.subr.bf16.mxu0 0
    %1073 = vmatpush1.bf16.msra.mxu0 %v1056
    %1074 = vmatprep.subr.bf16.mxu0 0
    %1075 = vmatpush1.bf16.msra.mxu0 %v1057
    %1076 = vmatprep.subr.bf16.mxu0 0
    %1077 = vmatpush1.bf16.msra.mxu0 %v1058
    %1078 = vmatprep.subr.bf16.mxu0 0
    %1079 = vmatpush1.bf16.msra.mxu0 %v1059
    %1080 = vmatprep.subr.bf16.mxu0 0
    %1081 = vmatpush1.bf16.msra.mxu0 %v1060
    %1082 = vmatprep.subr.bf16.mxu0 0
    %1083 = vmatpush1.bf16.msra.mxu0 %v1061
    %1084 = vmatprep.subr.bf16.mxu0 0
    %1085 = vmatpush1.bf16.msra.mxu0 %v1062
    %1086 = vmatprep.subr.bf16.mxu0 0
    %1087 = vmatpush1.bf16.msra.mxu0 %v1063
    %1088 = vmatprep.subr.bf16.mxu0 0
    %1089 = vmatpush1.bf16.msra.mxu0 0
    %1090 = vmatprep.subr.bf16.mxu0 0
    %1091 = vmatpush1.bf16.msra.mxu0 0
    %1092 = vmatprep.subr.bf16.mxu0 0
    %1093 = vmatpush1.bf16.msra.mxu0 0
    %1094 = vmatprep.subr.bf16.mxu0 0
    %1095 = vmatpush1.bf16.msra.mxu0 0
    %1096 = vmatprep.subr.bf16.mxu0 0
    %1097 = vmatpush1.bf16.msra.mxu0 0
    %1098 = vmatprep.subr.bf16.mxu0 0
    %1099 = vmatpush1.bf16.msra.mxu0 0
    %1100 = vmatprep.subr.bf16.mxu0 0
    %1101 = vmatpush1.bf16.msra.mxu0 0
    %1102 = vmatprep.subr.bf16.mxu0 0
    %1103 = vmatpush1.bf16.msra.mxu0 0
    %1104 = vmatprep.mubr.bf16.mxu0 0
    %1105 = vmatmul.mubr.bf16.gmra.mrb[0].mxu0 %v993
    %v1106 = vpop.f32.mrb[0].mxu0
    %v1107 = vadd.f32 %v1022, %v1106
    %v1108 = vpop.f32.mrb[0].mxu0
    %v1109 = vpop.f32.mrb[0].mxu0
    %v1110 = vadd.f32 %v1022, %v1109
    %v1111 = vpop.f32.mrb[0].mxu0
    %1112 = vmatprep.mubr.bf16.mxu0 0
    %1113 = vmatmul.mubr.bf16.gmra.mrb[0].mxu0 %v994
    %v1114 = vpop.f32.mrb[0].mxu0
    %v1115 = vadd.f32 %v1022, %v1114
    %v1116 = vpop.f32.mrb[0].mxu0
    %v1117 = vpop.f32.mrb[0].mxu0
    %v1118 = vadd.f32 %v1022, %v1117
    %v1119 = vpop.f32.mrb[0].mxu0
    %1120 = vmatprep.mubr.bf16.mxu0 0
    %1121 = vmatmul.mubr.bf16.gmra.mrb[0].mxu0 %v995
    %v1122 = vpop.f32.mrb[0].mxu0
    %v1123 = vadd.f32 %v1022, %v1122
    %v1124 = vpop.f32.mrb[0].mxu0
    %v1125 = vpop.f32.mrb[0].mxu0
    %v1126 = vadd.f32 %v1022, %v1125
    %v1127 = vpop.f32.mrb[0].mxu0
    %1128 = vmatprep.mubr.bf16.mxu0 0
    %1129 = vmatmul.mubr.bf16.gmra.mrb[0].mxu0 %v996
    %v1130 = vpop.f32.mrb[0].mxu0
    %v1131 = vadd.f32 %v1022, %v1130
    %v1132 = vpop.f32.mrb[0].mxu0
    %v1133 = vpop.f32.mrb[0].mxu0
    %v1134 = vadd.f32 %v1022, %v1133
    %v1135 = vpop.f32.mrb[0].mxu0
    %1136 = vmatprep.mubr.bf16.mxu0 0
    %1137 = vmatmul.mubr.bf16.gmra.mrb[0].mxu0 %v997
    %v1138 = vpop.f32.mrb[0].mxu0
    %v1139 = vadd.f32 %v1022, %v1138
    %v1140 = vpop.f32.mrb[0].mxu0
    %v1141 = vpop.f32.mrb[0].mxu0
    %v1142 = vadd.f32 %v1022, %v1141
    %v1143 = vpop.f32.mrb[0].mxu0
    %1144 = vmatprep.mubr.bf16.mxu0 0
    %1145 = vmatmul.mubr.bf16.gmra.mrb[0].mxu0 %v998
    %v1146 = vpop.f32.mrb[0].mxu0
    %v1147 = vadd.f32 %v1022, %v1146
    %v1148 = vpop.f32.mrb[0].mxu0
    %v1149 = vpop.f32.mrb[0].mxu0
    %v1150 = vadd.f32 %v1022, %v1149
    %v1151 = vpop.f32.mrb[0].mxu0
    %1152 = vmatprep.mubr.bf16.mxu0 0
    %1153 = vmatmul.mubr.bf16.gmra.mrb[0].mxu0 %v999
    %v1154 = vpop.f32.mrb[0].mxu0
    %v1155 = vadd.f32 %v1022, %v1154
    %v1156 = vpop.f32.mrb[0].mxu0
    %v1157 = vpop.f32.mrb[0].mxu0
    %v1158 = vadd.f32 %v1022, %v1157
    %v1159 = vpop.f32.mrb[0].mxu0
    %1160 = vmatprep.mubr.bf16.mxu0 0
    %1161 = vmatmul.mubr.bf16.gmra.mrb[0].mxu0 %v1000
    %v1162 = vpop.f32.mrb[0].mxu0
    %v1163 = vadd.f32 %v1022, %v1162
    %v1164 = vpop.f32.mrb[0].mxu0
    %v1165 = vpop.f32.mrb[0].mxu0
    %v1166 = vadd.f32 %v1022, %v1165
    %v1167 = vpop.f32.mrb[0].mxu0
    %1168 = vdwg.mxu0
    %v1169 = vmax.f32 %v1107, 0.0
    %v1170 = vmax.f32 %v1110, 0.0
    %v1171 = vmax.f32 %v1115, 0.0
    %v1172 = vmax.f32 %v1118, 0.0
    %v1173 = vmax.f32 %v1123, 0.0
    %v1174 = vmax.f32 %v1126, 0.0
    %v1175 = vmax.f32 %v1131, 0.0
    %v1176 = vmax.f32 %v1134, 0.0
    %v1177 = vmax.f32 %v1139, 0.0
    %v1178 = vmax.f32 %v1142, 0.0
    %v1179 = vmax.f32 %v1147, 0.0
    %v1180 = vmax.f32 %v1150, 0.0
    %v1181 = vmax.f32 %v1155, 0.0
    %v1182 = vmax.f32 %v1158, 0.0
    %v1183 = vmax.f32 %v1163, 0.0
    %v1184 = vmax.f32 %v1166, 0.0
    %v1185 = vld [vmem:[#allocation5] sm:$0x1]
    %v1187 = vlaneseq
    %v1188 = vshrl.u32 %v1187, 7
    %v1189 = vsub.s32 0, %v1188
    %v1190 = vrot.slane %v1185, %v1189
    %v1192 = vmul.f32 %v1169, %v1190
    %v1193 = vmul.f32 %v1170, %v1190
    %v1194 = vmul.f32 %v1171, %v1190
    %v1195 = vmul.f32 %v1172, %v1190
    %v1196 = vmul.f32 %v1173, %v1190
    %v1197 = vmul.f32 %v1174, %v1190
    %v1198 = vmul.f32 %v1175, %v1190
    %v1199 = vmul.f32 %v1176, %v1190
    %v1200 = vmul.f32 %v1177, %v1190
    %v1201 = vmul.f32 %v1178, %v1190
    %v1202 = vmul.f32 %v1179, %v1190
    %v1203 = vmul.f32 %v1180, %v1190
    %v1204 = vmul.f32 %v1181, %v1190
    %v1205 = vmul.f32 %v1182, %v1190
    %v1206 = vmul.f32 %v1183, %v1190
    %v1207 = vmul.f32 %v1184, %v1190
    %v1208 = vld [vmem:[%s5] sm:$0x1]
    %v1210 = vlaneseq
    %v1211 = vshrl.u32 %v1210, 7
    %v1212 = vsub.s32 0, %v1211
    %v1213 = vrot.slane %v1208, %v1212
    %v1215 = vadd.f32 %v1192, %v1213
    %v1216 = vadd.f32 %v1193, %v1213
    %v1217 = vadd.f32 %v1194, %v1213
    %v1218 = vadd.f32 %v1195, %v1213
    %v1219 = vadd.f32 %v1196, %v1213
    %v1220 = vadd.f32 %v1197, %v1213
    %v1221 = vadd.f32 %v1198, %v1213
    %v1222 = vadd.f32 %v1199, %v1213
    %v1223 = vadd.f32 %v1200, %v1213
    %v1224 = vadd.f32 %v1201, %v1213
    %v1225 = vadd.f32 %v1202, %v1213
    %v1226 = vadd.f32 %v1203, %v1213
    %v1227 = vadd.f32 %v1204, %v1213
    %v1228 = vadd.f32 %v1205, %v1213
    %v1229 = vadd.f32 %v1206, %v1213
    %v1230 = vadd.f32 %v1207, %v1213
    %v1247 = vrot.slane %v1215, 7
    %v1248 = vrot.slane %v1216, 7
    %v1249 = vsel %vm684, %v1247, %v1248
    %v1250 = vrot.slane %v1217, 7
    %v1251 = vsel %vm684, %v1248, %v1250
    %v1252 = vrot.slane %v1218, 7
    %v1253 = vsel %vm684, %v1250, %v1252
    %v1254 = vrot.slane %v1219, 7
    %v1255 = vsel %vm684, %v1252, %v1254
    %v1256 = vrot.slane %v1220, 7
    %v1257 = vsel %vm684, %v1254, %v1256
    %v1258 = vrot.slane %v1221, 7
    %v1259 = vsel %vm684, %v1256, %v1258
    %v1260 = vrot.slane %v1222, 7
    %v1261 = vsel %vm684, %v1258, %v1260
    %v1262 = vrot.slane %v1223, 7
    %v1263 = vsel %vm684, %v1260, %v1262
    %v1264 = vrot.slane %v1224, 7
    %v1265 = vsel %vm684, %v1262, %v1264
    %v1266 = vrot.slane %v1225, 7
    %v1267 = vsel %vm684, %v1264, %v1266
    %v1268 = vrot.slane %v1226, 7
    %v1269 = vsel %vm684, %v1266, %v1268
    %v1270 = vrot.slane %v1227, 7
    %v1271 = vsel %vm684, %v1268, %v1270
    %v1272 = vrot.slane %v1228, 7
    %v1273 = vsel %vm684, %v1270, %v1272
    %v1274 = vrot.slane %v1229, 7
    %v1275 = vsel %vm684, %v1272, %v1274
    %v1276 = vrot.slane %v1230, 7
    %v1277 = vsel %vm684, %v1274, %v1276
    %v1294 = vsel %vm684, 0.0, %v1247
    %v1295 = vmul.f32 %v1294, %v604
    %v1296 = vmul.f32 %v1249, %v605
    %v1297 = vmul.f32 %v1251, %v606
    %v1298 = vmul.f32 %v1253, %v607
    %v1299 = vmul.f32 %v1255, %v608
    %v1300 = vmul.f32 %v1257, %v609
    %v1301 = vmul.f32 %v1259, %v610
    %v1302 = vmul.f32 %v1261, %v611
    %v1303 = vmul.f32 %v1263, %v612
    %v1304 = vmul.f32 %v1265, %v613
    %v1305 = vmul.f32 %v1267, %v614
    %v1306 = vmul.f32 %v1269, %v615
    %v1307 = vmul.f32 %v1271, %v616
    %v1308 = vmul.f32 %v1273, %v617
    %v1309 = vmul.f32 %v1275, %v618
    %v1310 = vmul.f32 %v1277, %v619
    %v1311 = vrot.slane %v1215, 1
    %v1312 = vrot.slane %v1216, 1
    %v1313 = vsel %vm749, %v1311, %v1312
    %v1314 = vrot.slane %v1217, 1
    %v1315 = vsel %vm749, %v1312, %v1314
    %v1316 = vrot.slane %v1218, 1
    %v1317 = vsel %vm749, %v1314, %v1316
    %v1318 = vrot.slane %v1219, 1
    %v1319 = vsel %vm749, %v1316, %v1318
    %v1320 = vrot.slane %v1220, 1
    %v1321 = vsel %vm749, %v1318, %v1320
    %v1322 = vrot.slane %v1221, 1
    %v1323 = vsel %vm749, %v1320, %v1322
    %v1324 = vrot.slane %v1222, 1
    %v1325 = vsel %vm749, %v1322, %v1324
    %v1326 = vrot.slane %v1223, 1
    %v1327 = vsel %vm749, %v1324, %v1326
    %v1328 = vrot.slane %v1224, 1
    %v1329 = vsel %vm749, %v1326, %v1328
    %v1330 = vrot.slane %v1225, 1
    %v1331 = vsel %vm749, %v1328, %v1330
    %v1332 = vrot.slane %v1226, 1
    %v1333 = vsel %vm749, %v1330, %v1332
    %v1334 = vrot.slane %v1227, 1
    %v1335 = vsel %vm749, %v1332, %v1334
    %v1336 = vrot.slane %v1228, 1
    %v1337 = vsel %vm749, %v1334, %v1336
    %v1338 = vrot.slane %v1229, 1
    %v1339 = vsel %vm749, %v1336, %v1338
    %v1340 = vrot.slane %v1230, 1
    %v1341 = vsel %vm749, %v1338, %v1340
    %v1358 = vsel %vm749, %v1340, 0.0
    %v1359 = vmul.f32 %v1313, %v652
    %v1360 = vmul.f32 %v1315, %v653
    %v1361 = vmul.f32 %v1317, %v654
    %v1362 = vmul.f32 %v1319, %v655
    %v1363 = vmul.f32 %v1321, %v656
    %v1364 = vmul.f32 %v1323, %v657
    %v1365 = vmul.f32 %v1325, %v658
    %v1366 = vmul.f32 %v1327, %v659
    %v1367 = vmul.f32 %v1329, %v660
    %v1368 = vmul.f32 %v1331, %v661
    %v1369 = vmul.f32 %v1333, %v662
    %v1370 = vmul.f32 %v1335, %v663
    %v1371 = vmul.f32 %v1337, %v664
    %v1372 = vmul.f32 %v1339, %v665
    %v1373 = vmul.f32 %v1341, %v666
    %v1374 = vmul.f32 %v1358, %v667
    %1391 = vrot.lane.b32.xlu0 %v1295, 32
    %v1392 = vpop.permute.xlu0 %1391
    %1393 = vrot.lane.b32.xlu0 %v1296, 32
    %v1394 = vpop.permute.xlu0 %1393
    %1395 = vrot.lane.b32.xlu0 %v1297, 32
    %v1396 = vpop.permute.xlu0 %1395
    %1397 = vrot.lane.b32.xlu0 %v1298, 32
    %v1398 = vpop.permute.xlu0 %1397
    %1399 = vrot.lane.b32.xlu0 %v1299, 32
    %v1400 = vpop.permute.xlu0 %1399
    %1401 = vrot.lane.b32.xlu0 %v1300, 32
    %v1402 = vpop.permute.xlu0 %1401
    %1403 = vrot.lane.b32.xlu0 %v1301, 32
    %v1404 = vpop.permute.xlu0 %1403
    %1405 = vrot.lane.b32.xlu0 %v1302, 32
    %v1406 = vpop.permute.xlu0 %1405
    %1407 = vrot.lane.b32.xlu0 %v1303, 32
    %v1408 = vpop.permute.xlu0 %1407
    %1409 = vrot.lane.b32.xlu0 %v1304, 32
    %v1410 = vpop.permute.xlu0 %1409
    %1411 = vrot.lane.b32.xlu0 %v1305, 32
    %v1412 = vpop.permute.xlu0 %1411
    %1413 = vrot.lane.b32.xlu0 %v1306, 32
    %v1414 = vpop.permute.xlu0 %1413
    %1415 = vrot.lane.b32.xlu0 %v1307, 32
    %v1416 = vpop.permute.xlu0 %1415
    %1417 = vrot.lane.b32.xlu0 %v1308, 32
    %v1418 = vpop.permute.xlu0 %1417
    %1419 = vrot.lane.b32.xlu0 %v1309, 32
    %v1420 = vpop.permute.xlu0 %1419
    %1421 = vrot.lane.b32.xlu0 %v1310, 32
    %v1422 = vpop.permute.xlu0 %1421
    %1455 = vrot.lane.b32.xlu0 %v1359, 64
    %v1456 = vpop.permute.xlu0 %1455
    %1457 = vrot.lane.b32.xlu0 %v1360, 64
    %v1458 = vpop.permute.xlu0 %1457
    %1459 = vrot.lane.b32.xlu0 %v1361, 64
    %v1460 = vpop.permute.xlu0 %1459
    %1461 = vrot.lane.b32.xlu0 %v1362, 64
    %v1462 = vpop.permute.xlu0 %1461
    %1463 = vrot.lane.b32.xlu0 %v1363, 64
    %v1464 = vpop.permute.xlu0 %1463
    %1465 = vrot.lane.b32.xlu0 %v1364, 64
    %v1466 = vpop.permute.xlu0 %1465
    %1467 = vrot.lane.b32.xlu0 %v1365, 64
    %v1468 = vpop.permute.xlu0 %1467
    %1469 = vrot.lane.b32.xlu0 %v1366, 64
    %v1470 = vpop.permute.xlu0 %1469
    %1471 = vrot.lane.b32.xlu0 %v1367, 64
    %v1472 = vpop.permute.xlu0 %1471
    %1473 = vrot.lane.b32.xlu0 %v1368, 64
    %v1474 = vpop.permute.xlu0 %1473
    %1475 = vrot.lane.b32.xlu0 %v1369, 64
    %v1476 = vpop.permute.xlu0 %1475
    %1477 = vrot.lane.b32.xlu0 %v1370, 64
    %v1478 = vpop.permute.xlu0 %1477
    %1479 = vrot.lane.b32.xlu0 %v1371, 64
    %v1480 = vpop.permute.xlu0 %1479
    %1481 = vrot.lane.b32.xlu0 %v1372, 64
    %v1482 = vpop.permute.xlu0 %1481
    %1483 = vrot.lane.b32.xlu0 %v1373, 64
    %v1484 = vpop.permute.xlu0 %1483
    %1485 = vrot.lane.b32.xlu0 %v1374, 64
    %v1486 = vpop.permute.xlu0 %1485
    %v1503 = vsel %vm942, %v1215, %v1392
    %v1504 = vsel %vm942, %v1216, %v1394
    %v1505 = vsel %vm942, %v1217, %v1396
    %v1506 = vsel %vm942, %v1218, %v1398
    %v1507 = vsel %vm942, %v1219, %v1400
    %v1508 = vsel %vm942, %v1220, %v1402
    %v1509 = vsel %vm942, %v1221, %v1404
    %v1510 = vsel %vm942, %v1222, %v1406
    %v1511 = vsel %vm942, %v1223, %v1408
    %v1512 = vsel %vm942, %v1224, %v1410
    %v1513 = vsel %vm942, %v1225, %v1412
    %v1514 = vsel %vm942, %v1226, %v1414
    %v1515 = vsel %vm942, %v1227, %v1416
    %v1516 = vsel %vm942, %v1228, %v1418
    %v1517 = vsel %vm942, %v1229, %v1420
    %v1518 = vsel %vm942, %v1230, %v1422
    %v1519 = vsel %vm959, %v1503, %v1456
    %v1520 = vsel %vm959, %v1504, %v1458
    %v1521 = vsel %vm959, %v1505, %v1460
    %v1522 = vsel %vm959, %v1506, %v1462
    %v1523 = vsel %vm959, %v1507, %v1464
    %v1524 = vsel %vm959, %v1508, %v1466
    %v1525 = vsel %vm959, %v1509, %v1468
    %v1526 = vsel %vm959, %v1510, %v1470
    %v1527 = vsel %vm959, %v1511, %v1472
    %v1528 = vsel %vm959, %v1512, %v1474
    %v1529 = vsel %vm959, %v1513, %v1476
    %v1530 = vsel %vm959, %v1514, %v1478
    %v1531 = vsel %vm959, %v1515, %v1480
    %v1532 = vsel %vm959, %v1516, %v1482
    %v1533 = vsel %vm959, %v1517, %v1484
    %v1534 = vsel %vm959, %v1518, %v1486
    %v1535 = vsel %vm976, %v1519, 0.0
    %v1536 = vsel %vm976, %v1520, 0.0
    %v1537 = vsel %vm976, %v1521, 0.0
    %v1538 = vsel %vm976, %v1522, 0.0
    %v1539 = vsel %vm976, %v1523, 0.0
    %v1540 = vsel %vm976, %v1524, 0.0
    %v1541 = vsel %vm976, %v1525, 0.0
    %v1542 = vsel %vm976, %v1526, 0.0
    %v1543 = vsel %vm976, %v1527, 0.0
    %v1544 = vsel %vm976, %v1528, 0.0
    %v1545 = vsel %vm976, %v1529, 0.0
    %v1546 = vsel %vm976, %v1530, 0.0
    %v1547 = vsel %vm976, %v1531, 0.0
    %v1548 = vsel %vm976, %v1532, 0.0
    %v1549 = vsel %vm976, %v1533, 0.0
    %v1550 = vsel %vm976, %v1534, 0.0
    %v1551 = vpack.c.bf16 %v1536, %v1535
    %v1552 = vpack.c.bf16 %v1538, %v1537
    %v1553 = vpack.c.bf16 %v1540, %v1539
    %v1554 = vpack.c.bf16 %v1542, %v1541
    %v1555 = vpack.c.bf16 %v1544, %v1543
    %v1556 = vpack.c.bf16 %v1546, %v1545
    %v1557 = vpack.c.bf16 %v1548, %v1547
    %v1558 = vpack.c.bf16 %v1550, %v1549
    %v1559 = vld [vmem:[#allocation7] sm:$0xf]
    %v1560 = vld [vmem:[#allocation7 + $0x4] sm:$0xf]
    %v1561 = vld [vmem:[#allocation7 + $0x8] sm:$0xf]
    %v1562 = vld [vmem:[#allocation7 + $0xc] sm:$0xf]
    %v1563 = vld [vmem:[#allocation7 + $0x10] sm:$0xf]
    %v1564 = vld [vmem:[#allocation7 + $0x14] sm:$0xf]
    %v1565 = vld [vmem:[#allocation7 + $0x18] sm:$0xf]
    %v1566 = vld [vmem:[#allocation7 + $0x1c] sm:$0xf]
    %v1567 = vld [vmem:[#allocation7 + $0x20] sm:$0xf]
    %v1568 = vld [vmem:[#allocation7 + $0x24] sm:$0xf]
    %v1569 = vld [vmem:[#allocation7 + $0x28] sm:$0xf]
    %v1570 = vld [vmem:[#allocation7 + $0x2c] sm:$0xf]
    %v1571 = vld [vmem:[#allocation7 + $0x30] sm:$0xf]
    %v1572 = vld [vmem:[#allocation7 + $0x34] sm:$0xf]
    %v1573 = vld [vmem:[#allocation7 + $0x38] sm:$0xf]
    %v1574 = vld [vmem:[#allocation7 + $0x3c] sm:$0xf]
    %v1575 = vld [vmem:[%s7] sm:$0x1]
    %v1577 = vlaneseq
    %v1578 = vshrl.u32 %v1577, 7
    %v1579 = vsub.s32 0, %v1578
    %v1580 = vrot.slane %v1575, %v1579
    %v1598 = vunpack.c.l.b16 %v1559
    %v1599 = vunpack.c.l.b16 %v1560
    %v1600 = vunpack.c.l.b16 %v1561
    %v1601 = vunpack.c.l.b16 %v1562
    %v1602 = vunpack.c.l.b16 %v1563
    %v1603 = vunpack.c.l.b16 %v1564
    %v1604 = vunpack.c.l.b16 %v1565
    %v1605 = vunpack.c.l.b16 %v1566
    %v1606 = vunpack.c.l.b16 %v1567
    %v1607 = vunpack.c.l.b16 %v1568
    %v1608 = vunpack.c.l.b16 %v1569
    %v1609 = vunpack.c.l.b16 %v1570
    %v1610 = vunpack.c.l.b16 %v1571
    %v1611 = vunpack.c.l.b16 %v1572
    %v1612 = vunpack.c.l.b16 %v1573
    %v1613 = vunpack.c.l.b16 %v1574
    %v1614 = vpack.c.b16 %v1599, %v1598
    %v1615 = vpack.c.b16 %v1601, %v1600
    %v1616 = vpack.c.b16 %v1603, %v1602
    %v1617 = vpack.c.b16 %v1605, %v1604
    %v1618 = vpack.c.b16 %v1607, %v1606
    %v1619 = vpack.c.b16 %v1609, %v1608
    %v1620 = vpack.c.b16 %v1611, %v1610
    %v1621 = vpack.c.b16 %v1613, %v1612
    %1630 = vmatprep.subr.bf16.mxu0 0
    %1631 = vmatpush1.bf16.msra.mxu0 %v1614
    %1632 = vmatprep.subr.bf16.mxu0 0
    %1633 = vmatpush1.bf16.msra.mxu0 %v1615
    %1634 = vmatprep.subr.bf16.mxu0 0
    %1635 = vmatpush1.bf16.msra.mxu0 %v1616
    %1636 = vmatprep.subr.bf16.mxu0 0
    %1637 = vmatpush1.bf16.msra.mxu0 %v1617
    %1638 = vmatprep.subr.bf16.mxu0 0
    %1639 = vmatpush1.bf16.msra.mxu0 %v1618
    %1640 = vmatprep.subr.bf16.mxu0 0
    %1641 = vmatpush1.bf16.msra.mxu0 %v1619
    %1642 = vmatprep.subr.bf16.mxu0 0
    %1643 = vmatpush1.bf16.msra.mxu0 %v1620
    %1644 = vmatprep.subr.bf16.mxu0 0
    %1645 = vmatpush1.bf16.msra.mxu0 %v1621
    %1646 = vmatprep.subr.bf16.mxu0 0
    %1647 = vmatpush1.bf16.msra.mxu0 0
    %1648 = vmatprep.subr.bf16.mxu0 0
    %1649 = vmatpush1.bf16.msra.mxu0 0
    %1650 = vmatprep.subr.bf16.mxu0 0
    %1651 = vmatpush1.bf16.msra.mxu0 0
    %1652 = vmatprep.subr.bf16.mxu0 0
    %1653 = vmatpush1.bf16.msra.mxu0 0
    %1654 = vmatprep.subr.bf16.mxu0 0
    %1655 = vmatpush1.bf16.msra.mxu0 0
    %1656 = vmatprep.subr.bf16.mxu0 0
    %1657 = vmatpush1.bf16.msra.mxu0 0
    %1658 = vmatprep.subr.bf16.mxu0 0
    %1659 = vmatpush1.bf16.msra.mxu0 0
    %1660 = vmatprep.subr.bf16.mxu0 0
    %1661 = vmatpush1.bf16.msra.mxu0 0
    %1662 = vmatprep.mubr.bf16.mxu0 0
    %1663 = vmatmul.mubr.bf16.gmra.mrb[0].mxu0 %v1551
    %v1664 = vpop.f32.mrb[0].mxu0
    %v1665 = vadd.f32 %v1580, %v1664
    %v1666 = vpop.f32.mrb[0].mxu0
    %v1667 = vpop.f32.mrb[0].mxu0
    %v1668 = vadd.f32 %v1580, %v1667
    %v1669 = vpop.f32.mrb[0].mxu0
    %1670 = vmatprep.mubr.bf16.mxu0 0
    %1671 = vmatmul.mubr.bf16.gmra.mrb[0].mxu0 %v1552
    %v1672 = vpop.f32.mrb[0].mxu0
    %v1673 = vadd.f32 %v1580, %v1672
    %v1674 = vpop.f32.mrb[0].mxu0
    %v1675 = vpop.f32.mrb[0].mxu0
    %v1676 = vadd.f32 %v1580, %v1675
    %v1677 = vpop.f32.mrb[0].mxu0
    %1678 = vmatprep.mubr.bf16.mxu0 0
    %1679 = vmatmul.mubr.bf16.gmra.mrb[0].mxu0 %v1553
    %v1680 = vpop.f32.mrb[0].mxu0
    %v1681 = vadd.f32 %v1580, %v1680
    %v1682 = vpop.f32.mrb[0].mxu0
    %v1683 = vpop.f32.mrb[0].mxu0
    %v1684 = vadd.f32 %v1580, %v1683
    %v1685 = vpop.f32.mrb[0].mxu0
    %1686 = vmatprep.mubr.bf16.mxu0 0
    %1687 = vmatmul.mubr.bf16.gmra.mrb[0].mxu0 %v1554
    %v1688 = vpop.f32.mrb[0].mxu0
    %v1689 = vadd.f32 %v1580, %v1688
    %v1690 = vpop.f32.mrb[0].mxu0
    %v1691 = vpop.f32.mrb[0].mxu0
    %v1692 = vadd.f32 %v1580, %v1691
    %v1693 = vpop.f32.mrb[0].mxu0
    %1694 = vmatprep.mubr.bf16.mxu0 0
    %1695 = vmatmul.mubr.bf16.gmra.mrb[0].mxu0 %v1555
    %v1696 = vpop.f32.mrb[0].mxu0
    %v1697 = vadd.f32 %v1580, %v1696
    %v1698 = vpop.f32.mrb[0].mxu0
    %v1699 = vpop.f32.mrb[0].mxu0
    %v1700 = vadd.f32 %v1580, %v1699
    %v1701 = vpop.f32.mrb[0].mxu0
    %1702 = vmatprep.mubr.bf16.mxu0 0
    %1703 = vmatmul.mubr.bf16.gmra.mrb[0].mxu0 %v1556
    %v1704 = vpop.f32.mrb[0].mxu0
    %v1705 = vadd.f32 %v1580, %v1704
    %v1706 = vpop.f32.mrb[0].mxu0
    %v1707 = vpop.f32.mrb[0].mxu0
    %v1708 = vadd.f32 %v1580, %v1707
    %v1709 = vpop.f32.mrb[0].mxu0
    %1710 = vmatprep.mubr.bf16.mxu0 0
    %1711 = vmatmul.mubr.bf16.gmra.mrb[0].mxu0 %v1557
    %v1712 = vpop.f32.mrb[0].mxu0
    %v1713 = vadd.f32 %v1580, %v1712
    %v1714 = vpop.f32.mrb[0].mxu0
    %v1715 = vpop.f32.mrb[0].mxu0
    %v1716 = vadd.f32 %v1580, %v1715
    %v1717 = vpop.f32.mrb[0].mxu0
    %1718 = vmatprep.mubr.bf16.mxu0 0
    %1719 = vmatmul.mubr.bf16.gmra.mrb[0].mxu0 %v1558
    %v1720 = vpop.f32.mrb[0].mxu0
    %v1721 = vadd.f32 %v1580, %v1720
    %v1722 = vpop.f32.mrb[0].mxu0
    %v1723 = vpop.f32.mrb[0].mxu0
    %v1724 = vadd.f32 %v1580, %v1723
    %v1725 = vpop.f32.mrb[0].mxu0
    %1726 = vdwg.mxu0
    %v1727 = vmax.f32 %v1665, 0.0
    %v1728 = vmax.f32 %v1668, 0.0
    %v1729 = vmax.f32 %v1673, 0.0
    %v1730 = vmax.f32 %v1676, 0.0
    %v1731 = vmax.f32 %v1681, 0.0
    %v1732 = vmax.f32 %v1684, 0.0
    %v1733 = vmax.f32 %v1689, 0.0
    %v1734 = vmax.f32 %v1692, 0.0
    %v1735 = vmax.f32 %v1697, 0.0
    %v1736 = vmax.f32 %v1700, 0.0
    %v1737 = vmax.f32 %v1705, 0.0
    %v1738 = vmax.f32 %v1708, 0.0
    %v1739 = vmax.f32 %v1713, 0.0
    %v1740 = vmax.f32 %v1716, 0.0
    %v1741 = vmax.f32 %v1721, 0.0
    %v1742 = vmax.f32 %v1724, 0.0
    %v1743 = vld [vmem:[%s8] sm:$0x1]
    %v1745 = vlaneseq
    %v1746 = vshrl.u32 %v1745, 7
    %v1747 = vsub.s32 0, %v1746
    %v1748 = vrot.slane %v1743, %v1747
    %v1750 = vmul.f32 %v1727, %v1748
    %v1751 = vmul.f32 %v1728, %v1748
    %v1752 = vmul.f32 %v1729, %v1748
    %v1753 = vmul.f32 %v1730, %v1748
    %v1754 = vmul.f32 %v1731, %v1748
    %v1755 = vmul.f32 %v1732, %v1748
    %v1756 = vmul.f32 %v1733, %v1748
    %v1757 = vmul.f32 %v1734, %v1748
    %v1758 = vmul.f32 %v1735, %v1748
    %v1759 = vmul.f32 %v1736, %v1748
    %v1760 = vmul.f32 %v1737, %v1748
    %v1761 = vmul.f32 %v1738, %v1748
    %v1762 = vmul.f32 %v1739, %v1748
    %v1763 = vmul.f32 %v1740, %v1748
    %v1764 = vmul.f32 %v1741, %v1748
    %v1765 = vmul.f32 %v1742, %v1748
    %v1766 = vld [vmem:[%s9] sm:$0x1]
    %v1768 = vlaneseq
    %v1769 = vshrl.u32 %v1768, 7
    %v1770 = vsub.s32 0, %v1769
    %v1771 = vrot.slane %v1766, %v1770
    %v1773 = vadd.f32 %v1750, %v1771
    %v1774 = vadd.f32 %v1751, %v1771
    %v1775 = vadd.f32 %v1752, %v1771
    %v1776 = vadd.f32 %v1753, %v1771
    %v1777 = vadd.f32 %v1754, %v1771
    %v1778 = vadd.f32 %v1755, %v1771
    %v1779 = vadd.f32 %v1756, %v1771
    %v1780 = vadd.f32 %v1757, %v1771
    %v1781 = vadd.f32 %v1758, %v1771
    %v1782 = vadd.f32 %v1759, %v1771
    %v1783 = vadd.f32 %v1760, %v1771
    %v1784 = vadd.f32 %v1761, %v1771
    %v1785 = vadd.f32 %v1762, %v1771
    %v1786 = vadd.f32 %v1763, %v1771
    %v1787 = vadd.f32 %v1764, %v1771
    %v1788 = vadd.f32 %v1765, %v1771
    %v1789 = vpack.c.bf16 %v1774, %v1773
    %v1790 = vpack.c.bf16 %v1776, %v1775
    %v1791 = vpack.c.bf16 %v1778, %v1777
    %v1792 = vpack.c.bf16 %v1780, %v1779
    %v1793 = vpack.c.bf16 %v1782, %v1781
    %v1794 = vpack.c.bf16 %v1784, %v1783
    %v1795 = vpack.c.bf16 %v1786, %v1785
    %v1796 = vpack.c.bf16 %v1788, %v1787
    %v1797 = vld [vmem:[%s10] sm:$0xf]
    %v1798 = vld [vmem:[%s10 + $0x4] sm:$0xf]
    %v1799 = vld [vmem:[%s10 + $0x8] sm:$0xf]
    %v1800 = vld [vmem:[%s10 + $0xc] sm:$0xf]
    %v1801 = vld [vmem:[%s11] sm:$0x1]
    %v1803 = vlaneseq
    %v1804 = vshrl.u32 %v1803, 7
    %v1805 = vsub.s32 0, %v1804
    %v1806 = vrot.slane %v1801, %v1805
    %v1812 = vunpack.c.l.b16 %v1797
    %v1813 = vunpack.c.l.b16 %v1798
    %v1814 = vunpack.c.l.b16 %v1799
    %v1815 = vunpack.c.l.b16 %v1800
    %v1816 = vpack.c.b16 %v1813, %v1812
    %v1817 = vpack.c.b16 %v1815, %v1814
    %v1821 = vsel %vm942, %v1789, 0
    %v1824 = vsel %vm942, %v1790, 0
    %v1827 = vsel %vm942, %v1791, 0
    %v1830 = vsel %vm942, %v1792, 0
    %v1833 = vsel %vm942, %v1793, 0
    %v1836 = vsel %vm942, %v1794, 0
    %v1839 = vsel %vm942, %v1795, 0
    %v1842 = vsel %vm942, %v1796, 0
    %1844 = vmatprep.subr.bf16.mxu0 0
    %1845 = vmatpush1.bf16.msra.mxu0 %v1816
    %1846 = vmatprep.subr.bf16.mxu0 0
    %1847 = vmatpush1.bf16.msra.mxu0 %v1817
    %1848 = vmatprep.subr.bf16.mxu0 0
    %1849 = vmatpush1.bf16.msra.mxu0 0
    %1850 = vmatprep.subr.bf16.mxu0 0
    %1851 = vmatpush1.bf16.msra.mxu0 0
    %1852 = vmatprep.subr.bf16.mxu0 0
    %1853 = vmatpush1.bf16.msra.mxu0 0
    %1854 = vmatprep.subr.bf16.mxu0 0
    %1855 = vmatpush1.bf16.msra.mxu0 0
    %1856 = vmatprep.subr.bf16.mxu0 0
    %1857 = vmatpush1.bf16.msra.mxu0 0
    %1858 = vmatprep.subr.bf16.mxu0 0
    %1859 = vmatpush1.bf16.msra.mxu0 0
    %1860 = vmatprep.subr.bf16.mxu0 0
    %1861 = vmatpush1.bf16.msra.mxu0 0
    %1862 = vmatprep.subr.bf16.mxu0 0
    %1863 = vmatpush1.bf16.msra.mxu0 0
    %1864 = vmatprep.subr.bf16.mxu0 0
    %1865 = vmatpush1.bf16.msra.mxu0 0
    %1866 = vmatprep.subr.bf16.mxu0 0
    %1867 = vmatpush1.bf16.msra.mxu0 0
    %1868 = vmatprep.subr.bf16.mxu0 0
    %1869 = vmatpush1.bf16.msra.mxu0 0
    %1870 = vmatprep.subr.bf16.mxu0 0
    %1871 = vmatpush1.bf16.msra.mxu0 0
    %1872 = vmatprep.subr.bf16.mxu0 0
    %1873 = vmatpush1.bf16.msra.mxu0 0
    %1874 = vmatprep.subr.bf16.mxu0 0
    %1875 = vmatpush1.bf16.msra.mxu0 0
    %1876 = vmatprep.mubr.bf16.mxu0 0
    %1877 = vmatmul.mubr.bf16.gmra.mrb[0].mxu0 %v1821
    %v1878 = vpop.f32.mrb[0].mxu0
    %v1879 = vadd.f32 %v1806, %v1878
    %v1880 = vpop.f32.mrb[0].mxu0
    %v1881 = vpop.f32.mrb[0].mxu0
    %v1882 = vadd.f32 %v1806, %v1881
    %v1883 = vpop.f32.mrb[0].mxu0
    %1884 = vmatprep.mubr.bf16.mxu0 0
    %1885 = vmatmul.mubr.bf16.gmra.mrb[0].mxu0 %v1824
    %v1886 = vpop.f32.mrb[0].mxu0
    %v1887 = vadd.f32 %v1806, %v1886
    %v1888 = vpop.f32.mrb[0].mxu0
    %v1889 = vpop.f32.mrb[0].mxu0
    %v1890 = vadd.f32 %v1806, %v1889
    %v1891 = vpop.f32.mrb[0].mxu0
    %1892 = vmatprep.mubr.bf16.mxu0 0
    %1893 = vmatmul.mubr.bf16.gmra.mrb[0].mxu0 %v1827
    %v1894 = vpop.f32.mrb[0].mxu0
    %v1895 = vadd.f32 %v1806, %v1894
    %v1896 = vpop.f32.mrb[0].mxu0
    %v1897 = vpop.f32.mrb[0].mxu0
    %v1898 = vadd.f32 %v1806, %v1897
    %v1899 = vpop.f32.mrb[0].mxu0
    %1900 = vmatprep.mubr.bf16.mxu0 0
    %1901 = vmatmul.mubr.bf16.gmra.mrb[0].mxu0 %v1830
    %v1902 = vpop.f32.mrb[0].mxu0
    %v1903 = vadd.f32 %v1806, %v1902
    %v1904 = vpop.f32.mrb[0].mxu0
    %v1905 = vpop.f32.mrb[0].mxu0
    %v1906 = vadd.f32 %v1806, %v1905
    %v1907 = vpop.f32.mrb[0].mxu0
    %1908 = vmatprep.mubr.bf16.mxu0 0
    %1909 = vmatmul.mubr.bf16.gmra.mrb[0].mxu0 %v1833
    %v1910 = vpop.f32.mrb[0].mxu0
    %v1911 = vadd.f32 %v1806, %v1910
    %v1912 = vpop.f32.mrb[0].mxu0
    %v1913 = vpop.f32.mrb[0].mxu0
    %v1914 = vadd.f32 %v1806, %v1913
    %v1915 = vpop.f32.mrb[0].mxu0
    %1916 = vmatprep.mubr.bf16.mxu0 0
    %1917 = vmatmul.mubr.bf16.gmra.mrb[0].mxu0 %v1836
    %v1918 = vpop.f32.mrb[0].mxu0
    %v1919 = vadd.f32 %v1806, %v1918
    %v1920 = vpop.f32.mrb[0].mxu0
    %v1921 = vpop.f32.mrb[0].mxu0
    %v1922 = vadd.f32 %v1806, %v1921
    %v1923 = vpop.f32.mrb[0].mxu0
    %1924 = vmatprep.mubr.bf16.mxu0 0
    %1925 = vmatmul.mubr.bf16.gmra.mrb[0].mxu0 %v1839
    %v1926 = vpop.f32.mrb[0].mxu0
    %v1927 = vadd.f32 %v1806, %v1926
    %v1928 = vpop.f32.mrb[0].mxu0
    %v1929 = vpop.f32.mrb[0].mxu0
    %v1930 = vadd.f32 %v1806, %v1929
    %v1931 = vpop.f32.mrb[0].mxu0
    %1932 = vmatprep.mubr.bf16.mxu0 0
    %1933 = vmatmul.mubr.bf16.gmra.mrb[0].mxu0 %v1842
    %v1934 = vpop.f32.mrb[0].mxu0
    %v1935 = vadd.f32 %v1806, %v1934
    %v1936 = vpop.f32.mrb[0].mxu0
    %v1937 = vpop.f32.mrb[0].mxu0
    %v1938 = vadd.f32 %v1806, %v1937
    %v1939 = vpop.f32.mrb[0].mxu0
    %1940 = vdwg.mxu0
    %1941 = vst [vmem:[#allocation8] sm:$0xff] %v1879
    %1942 = vst [vmem:[#allocation8 + $0x8] sm:$0xff] %v1882
    %1943 = vst [vmem:[#allocation8 + $0x10] sm:$0xff] %v1887
    %1944 = vst [vmem:[#allocation8 + $0x18] sm:$0xff] %v1890
    %1945 = vst [vmem:[#allocation8 + $0x20] sm:$0xff] %v1895
    %1946 = vst [vmem:[#allocation8 + $0x28] sm:$0xff] %v1898
    %1947 = vst [vmem:[#allocation8 + $0x30] sm:$0xff] %v1903
    %1948 = vst [vmem:[#allocation8 + $0x38] sm:$0xff] %v1906
    %1949 = vst [vmem:[#allocation8 + $0x40] sm:$0xff] %v1911
    %1950 = vst [vmem:[#allocation8 + $0x48] sm:$0xff] %v1914
    %1951 = vst [vmem:[#allocation8 + $0x50] sm:$0xff] %v1919
    %1952 = vst [vmem:[#allocation8 + $0x58] sm:$0xff] %v1922
    %1953 = vst [vmem:[#allocation8 + $0x60] sm:$0xff] %v1927
    %1954 = vst [vmem:[#allocation8 + $0x68] sm:$0xff] %v1930
    %1955 = vst [vmem:[#allocation8 + $0x70] sm:$0xff] %v1935
    %1956 = vst [vmem:[#allocation8 + $0x78] sm:$0xff] %v1938
    // Predicated region
    $region62: #{tpu_custom_call.1} parent=1 // pred_check
      _
    $region63: #{tpu_custom_call.1} parent=1 // pred_check_branch
      %1958 = sbr.rel (0) target = $region65
    $region64: #{tpu_custom_call.1} parent=1 // pred_region
      %s1960 = ssub.s32 2048, 2048
      %1961 = vsyncadd [#allocation4], %s1960
      %s1962 = sshll.u32 [#allocation8], 4
      %s1963 = int_to_ptr.vmem [resolvable:$true] %s1962
      %1968 = dma.vmem_to_hbm [thread:$0]  %s1963, 2048, %s12, [#allocation4], 128, 128, 8
    $region65: #{tpu_custom_call.1} parent=1 // pred_fallthru
      _
    // Predicated region
    $region66: #{tpu_custom_call.1} parent=1 // pred_check
      _
    $region67: #{tpu_custom_call.1} parent=1 // pred_check_branch
      %1970 = sbr.rel (0) target = $region69
    $region68: #{tpu_custom_call.1} parent=1 // pred_region
      %1971 = dma.done [#allocation4], 2048
    $region69: #{tpu_custom_call.1} parent=1 // pred_fallthru
      _
    %1972 = vsyncpa [#allocation3], 1
    %1973 = vsyncpa [#allocation6], 1
    %1974 = vsyncpa [#allocation4], 1

</llo_original>
